<compile_context>
chip_gen: v5e
topology: v5e:2x2
jax: 0.10.0
libtpu: 0.0.40
codegen_flags: <defaults>
</compile_context>

<pallas_src>
import functools

import jax
import jax.numpy as jnp
from jax.experimental import pallas as pl
from jax.experimental.pallas import tpu as pltpu

BN_EPS = 1e-5
LEAKY_SLOPE = 0.01  # torch.nn.LeakyReLU default negative_slope


def _round_up(n, m):
    return ((n + m - 1) // m) * m


# ---------------------------------------------------------------------------
# Kernels
# ---------------------------------------------------------------------------
def _mm_stats_kernel(x_ref, w_ref, y_ref, st_ref, *, mm_dtype):
    """Layer 1: y = x @ w (bias cancelled by BN); accumulate sum / sumsq."""
    i = pl.program_id(0)
    y = jnp.dot(x_ref[...].astype(mm_dtype), w_ref[...],
                preferred_element_type=jnp.float32)
    y_ref[...] = y.astype(y_ref.dtype)

    @pl.when(i == 0)
    def _():
        st_ref[...] = jnp.zeros_like(st_ref)

    st_ref[0:1, :] += jnp.sum(y, axis=0, keepdims=True)
    st_ref[1:2, :] += jnp.sum(y * y, axis=0, keepdims=True)


def _bn_act_mm_stats_kernel(yp_ref, ss_ref, w_ref, y_ref, st_ref, *,
                            mm_dtype, block_b, true_b):
    """Folded BN (one FMA) + LeakyReLU on the previous layer's pre-BN output,
    then y = h @ w for the next layer; accumulate that layer's sum / sumsq."""
    i = pl.program_id(0)
    h = yp_ref[...].astype(jnp.float32) * ss_ref[0:1, :] + ss_ref[1:2, :]
    h = jnp.where(h > 0, h, LEAKY_SLOPE * h)
    if true_b is not None:  # zero padded rows so they don't pollute the stats
        row = i * block_b + jax.lax.broadcasted_iota(jnp.int32, (block_b, 1), 0)
        h = jnp.where(row < true_b, h, 0.0)
    y = jnp.dot(h.astype(mm_dtype), w_ref[...],
                preferred_element_type=jnp.float32)
    y_ref[...] = y.astype(y_ref.dtype)

    @pl.when(i == 0)
    def _():
        st_ref[...] = jnp.zeros_like(st_ref)

    st_ref[0:1, :] += jnp.sum(y, axis=0, keepdims=True)
    st_ref[1:2, :] += jnp.sum(y * y, axis=0, keepdims=True)


def _bn_act_head_kernel(yp_ref, ss_ref, w4t_ref, b4_ref, out_ref):
    """Folded BN + LeakyReLU, then Linear(16,1) on the VPU/XLU + sigmoid."""
    h = yp_ref[...].astype(jnp.float32) * ss_ref[0:1, :] + ss_ref[1:2, :]
    h = jnp.where(h > 0, h, LEAKY_SLOPE * h)
    z = jnp.sum(h * w4t_ref[...], axis=-1, keepdims=True) + b4_ref[...]
    out_ref[...] = jax.nn.sigmoid(z)


# ---------------------------------------------------------------------------
# Wrapper
# ---------------------------------------------------------------------------
def _bn_fold(st, gamma, beta, n):
    """Fold batch stats + affine params into one FMA: y * scale + shift."""
    mean = st[0:1, :] / n
    var = jnp.maximum(st[1:2, :] / n - mean * mean, 0.0)  # biased batch var
    scale = gamma * jax.lax.rsqrt(var + BN_EPS)
    shift = beta - mean * scale
    return jnp.concatenate([scale, shift], axis=0)        # [2, F]


def _layer_call(kernel, args, in_specs, f_out, b_pad, block_b, nb, act_dtype):
    return pl.pallas_call(
        kernel,
        grid=(nb,),
        in_specs=in_specs,
        out_specs=(pl.BlockSpec((block_b, f_out), lambda i: (i, 0)),
                   pl.BlockSpec((2, f_out), lambda i: (0, 0))),
        out_shape=(jax.ShapeDtypeStruct((b_pad, f_out), act_dtype),
                   jax.ShapeDtypeStruct((2, f_out), jnp.float32)),
        # stats accumulate across the batch grid -> reduction axis must be
        # "arbitrary" (also keeps BN numerics single-core-safe on v7x).
        compiler_params=pltpu.CompilerParams(
            dimension_semantics=("arbitrary",)),
    )(*args)


@functools.partial(jax.jit, static_argnames=("block_b", "mm_dtype"))
def downstream_forward(x, params, *, block_b=512, mm_dtype=jnp.float32):
    (w1, b1, g1, be1,
     w2, b2, g2, be2,
     w3, b3, g3, be3,
     w4, b4) = params
    del b1, b2, b3  # cancelled exactly by training-mode BN (mean subtraction)

    B, f_in = x.shape
    block_b = max(8, (min(int(block_b), _round_up(B, 8)) // 8) * 8)
    b_pad = _round_up(B, block_b)
    nb = b_pad // block_b
    true_b = None if b_pad == B else B
    if true_b is not None:
        x = jnp.pad(x, ((0, b_pad - B), (0, 0)))  # zero rows; masked in stats

    act_dtype = mm_dtype  # storage dtype of intermediate pre-BN activations
    w1c, w2c, w3c = (w1.astype(mm_dtype), w2.astype(mm_dtype),
                     w3.astype(mm_dtype))
    w4t = jnp.transpose(w4).astype(jnp.float32)            # [1, 16]

    # ---- layer 1: matmul + batch stats -------------------------------------
    y1, st1 = _layer_call(
        functools.partial(_mm_stats_kernel, mm_dtype=mm_dtype),
        (x, w1c),
        (pl.BlockSpec((block_b, f_in), lambda i: (i, 0)),
         pl.BlockSpec(w1c.shape, lambda i: (0, 0))),
        w1c.shape[1], b_pad, block_b, nb, act_dtype)

    # ---- layer 2: BN1+LReLU fused with matmul2 + stats ----------------------
    ss1 = _bn_fold(st1, g1, be1, float(B))
    y2, st2 = _layer_call(
        functools.partial(_bn_act_mm_stats_kernel, mm_dtype=mm_dtype,
                          block_b=block_b, true_b=true_b),
        (y1, ss1, w2c),
        (pl.BlockSpec((block_b, w1c.shape[1]), lambda i: (i, 0)),
         pl.BlockSpec(ss1.shape, lambda i: (0, 0)),
         pl.BlockSpec(w2c.shape, lambda i: (0, 0))),
        w2c.shape[1], b_pad, block_b, nb, act_dtype)

    # ---- layer 3: BN2+LReLU fused with matmul3 + stats ----------------------
    ss2 = _bn_fold(st2, g2, be2, float(B))
    y3, st3 = _layer_call(
        functools.partial(_bn_act_mm_stats_kernel, mm_dtype=mm_dtype,
                          block_b=block_b, true_b=true_b),
        (y2, ss2, w3c),
        (pl.BlockSpec((block_b, w2c.shape[1]), lambda i: (i, 0)),
         pl.BlockSpec(ss2.shape, lambda i: (0, 0)),
         pl.BlockSpec(w3c.shape, lambda i: (0, 0))),
        w3c.shape[1], b_pad, block_b, nb, act_dtype)

    # ---- head: BN3 + LeakyReLU + Linear(16,1) + sigmoid ----------------------
    ss3 = _bn_fold(st3, g3, be3, float(B))
    out = pl.pallas_call(
        _bn_act_head_kernel,
        grid=(nb,),
        in_specs=(pl.BlockSpec((block_b, w3c.shape[1]), lambda i: (i, 0)),
                  pl.BlockSpec(ss3.shape, lambda i: (0, 0)),
                  pl.BlockSpec(w4t.shape, lambda i: (0, 0)),
                  pl.BlockSpec(b4.shape, lambda i: (0, 0))),
        out_specs=pl.BlockSpec((block_b, 1), lambda i: (i, 0)),
        out_shape=jax.ShapeDtypeStruct((b_pad, 1), jnp.float32),
        # no cross-block state here -> safe to shard across cores
        compiler_params=pltpu.CompilerParams(
            dimension_semantics=("parallel",)),
    )(y3, ss3, w4t, b4)

    return out[:B]


# ---------------------------------------------------------------------------
# Params / reference
# ---------------------------------------------------------------------------
def init_params(key):
    """Deterministic init mirroring torch.nn.Linear / BatchNorm1d shapes."""
    dims = [(142, 128), (128, 64), (64, 16), (16, 1)]
    params = []
    for i, (fin, fout) in enumerate(dims):
        key, kw, kb = jax.random.split(key, 3)
        bound = 1.0 / jnp.sqrt(float(fin))
        w = jax.random.uniform(kw, (fin, fout), jnp.float32, -bound, bound)
        b = jax.random.uniform(kb, (1, fout), jnp.float32, -bound, bound)
        params.extend([w, b])
        if i < 3:  # BatchNorm1d affine params (default init: gamma=1, beta=0)
            params.extend([jnp.ones((1, fout), jnp.float32),
                           jnp.zeros((1, fout), jnp.float32)])
    return params


def reference_forward(x, params):
    """Pure-JAX reference (keeps the biases, two-pass variance, all f32)."""
    (w1, b1, g1, be1, w2, b2, g2, be2, w3, b3, g3, be3, w4, b4) = params

    def blk(h, w, b, g, be):
        y = h @ w + b
        m = jnp.mean(y, axis=0, keepdims=True)
        v = jnp.mean((y - m) ** 2, axis=0, keepdims=True)
        y = (y - m) / jnp.sqrt(v + BN_EPS) * g + be
        return jnp.where(y > 0, y, LEAKY_SLOPE * y)

    h = blk(x, w1, b1, g1, be1)
    h = blk(h, w2, b2, g2, be2)
    h = blk(h, w3, b3, g3, be3)
    return jax.nn.sigmoid(h @ w4 + b4)


if __name__ == "__main__":
    key = jax.random.PRNGKey(0)
    kx, kp = jax.random.split(key)

    # Deliberately NOT a block multiple: exercises padding + stats masking.
    B = 200
    x = jax.random.normal(kx, (B, 142), jnp.float32)
    params = tuple(init_params(kp))
    ref = reference_forward(x, params)

    # f32 matmul path: tight match vs. the PyTorch-semantics reference.
    out = jax.block_until_ready(
        downstream_forward(x, params, block_b=128, mm_dtype=jnp.float32))
    assert out.shape == (B, 1)
    assert jnp.allclose(out, ref, atol=1e-4, rtol=1e-4), "f32 mismatch vs ref"

    # bf16 matmul path (recommended on v5e/v6e/v7x); stats/elementwise in f32.
    out_bf16 = jax.block_until_ready(
        downstream_forward(x, params, block_b=128, mm_dtype=jnp.bfloat16))
    assert out_bf16.shape == (B, 1)
    assert bool(jnp.all(jnp.isfinite(out_bf16)))
    assert float(jnp.max(jnp.abs(out_bf16 - ref))) < 5e-2, "bf16 drift too large"

    print("KERNEL_OK")
</pallas_src>

<mosaic_0001>
module attributes {stable_mosaic.version = 11 : i64} {
  func.func @_mm_stats_kernel(%arg0: i32, %arg1: memref<128x142xf32, #tpu.memory_space<vmem>>, %arg2: memref<142x128xf32, #tpu.memory_space<vmem>>, %arg3: memref<128x128xf32, #tpu.memory_space<vmem>>, %arg4: memref<2x128xf32, #tpu.memory_space<vmem>>) attributes {dimension_semantics = [#tpu.dimension_semantics<arbitrary>], iteration_bounds = array<i64: 2>, scalar_prefetch = 0 : i64, scratch_operands = 0 : i64, tpu.core_type = #tpu.core_type<tc>, window_params = [{transform_indices = @transform_0, window_bounds = array<i64: 128, 142>}, {pipeline_mode = #tpu.pipeline_mode<synchronous>, transform_indices = @transform_1, window_bounds = array<i64: 142, 128>}, {transform_indices = @transform_2, window_bounds = array<i64: 128, 128>}, {pipeline_mode = #tpu.pipeline_mode<synchronous>, transform_indices = @transform_3, window_bounds = array<i64: 2, 128>}]} {
    %c0 = arith.constant 0 : index
    %c0_0 = arith.constant 0 : index
    %0 = vector.load %arg1[%c0, %c0_0] : memref<128x142xf32, #tpu.memory_space<vmem>>, vector<128x142xf32>
    %c0_1 = arith.constant 0 : index
    %c0_2 = arith.constant 0 : index
    %1 = vector.load %arg2[%c0_1, %c0_2] : memref<142x128xf32, #tpu.memory_space<vmem>>, vector<142x128xf32>
    %cst = arith.constant dense<0.000000e+00> : vector<128x128xf32>
    %2 = tpu.matmul %0, %1, %cst {dimension_numbers = #tpu.dot_dimension_numbers<[1], [0], [0], [1], [0, 0, 1, 1], [], []>} : vector<128x142xf32>, vector<142x128xf32>, vector<128x128xf32> -> vector<128x128xf32>
    %c0_3 = arith.constant 0 : index
    %c0_4 = arith.constant 0 : index
    %3 = vector.load %arg3[%c0_3, %c0_4] : memref<128x128xf32, #tpu.memory_space<vmem>>, vector<128x128xf32>
    tpu.vector_store %arg3[%c0_3, %c0_4], %2 {strides = array<i32>} : memref<128x128xf32, #tpu.memory_space<vmem>>, vector<128x128xf32>,
    %c0_i32 = arith.constant 0 : i32
    %4 = arith.cmpi eq, %arg0, %c0_i32 : i32
    %5 = arith.extui %4 : i1 to i32
    %c0_i32_5 = arith.constant 0 : i32
    %6 = arith.cmpi ne, %5, %c0_i32_5 : i32
    scf.if %6 {
      %cst_15 = arith.constant 0.000000e+00 : f32
      %18 = vector.broadcast %cst_15 : f32 to vector<2x128xf32>
      %c0_16 = arith.constant 0 : index
      %c0_17 = arith.constant 0 : index
      %19 = vector.load %arg4[%c0_16, %c0_17] : memref<2x128xf32, #tpu.memory_space<vmem>>, vector<2x128xf32>
      tpu.vector_store %arg4[%c0_16, %c0_17], %18 {strides = array<i32>} : memref<2x128xf32, #tpu.memory_space<vmem>>, vector<2x128xf32>,
    } else {
    }
    %c0_6 = arith.constant 0 : index
    %c0_7 = arith.constant 0 : index
    %7 = vector.load %arg4[%c0_6, %c0_7] : memref<2x128xf32, #tpu.memory_space<vmem>>, vector<1x128xf32>
    %cst_8 = arith.constant dense<0.000000e+00> : vector<128xf32>
    %8 = vector.multi_reduction <add>, %2, %cst_8 [0] : vector<128x128xf32> to vector<128xf32>
    %9 = vector.shape_cast %8 : vector<128xf32> to vector<1x128xf32>
    %10 = arith.addf %7, %9 : vector<1x128xf32>
    %c0_9 = arith.constant 0 : index
    %c0_10 = arith.constant 0 : index
    %11 = vector.load %arg4[%c0_9, %c0_10] : memref<2x128xf32, #tpu.memory_space<vmem>>, vector<1x128xf32>
    tpu.vector_store %arg4[%c0_9, %c0_10], %10 {strides = array<i32>} : memref<2x128xf32, #tpu.memory_space<vmem>>, vector<1x128xf32>,
    %c1 = arith.constant 1 : index
    %c0_11 = arith.constant 0 : index
    %12 = vector.load %arg4[%c1, %c0_11] : memref<2x128xf32, #tpu.memory_space<vmem>>, vector<1x128xf32>
    %13 = arith.mulf %2, %2 : vector<128x128xf32>
    %cst_12 = arith.constant dense<0.000000e+00> : vector<128xf32>
    %14 = vector.multi_reduction <add>, %13, %cst_12 [0] : vector<128x128xf32> to vector<128xf32>
    %15 = vector.shape_cast %14 : vector<128xf32> to vector<1x128xf32>
    %16 = arith.addf %12, %15 : vector<1x128xf32>
    %c1_13 = arith.constant 1 : index
    %c0_14 = arith.constant 0 : index
    %17 = vector.load %arg4[%c1_13, %c0_14] : memref<2x128xf32, #tpu.memory_space<vmem>>, vector<1x128xf32>
    tpu.vector_store %arg4[%c1_13, %c0_14], %16 {strides = array<i32>} : memref<2x128xf32, #tpu.memory_space<vmem>>, vector<1x128xf32>,
    return
  }
  func.func @transform_0(%arg0: i32) -> (i32, i32) {
    %c0_i32 = arith.constant 0 : i32
    %c0_i32_0 = arith.constant 0 : i32
    return %arg0, %c0_i32 : i32, i32
  }
  func.func @transform_1(%arg0: i32) -> (i32, i32) {
    %c0_i32 = arith.constant 0 : i32
    %c0_i32_0 = arith.constant 0 : i32
    %c0_i32_1 = arith.constant 0 : i32
    return %c0_i32, %c0_i32_0 : i32, i32
  }
  func.func @transform_2(%arg0: i32) -> (i32, i32) {
    %c0_i32 = arith.constant 0 : i32
    %c0_i32_0 = arith.constant 0 : i32
    return %arg0, %c0_i32 : i32, i32
  }
  func.func @transform_3(%arg0: i32) -> (i32, i32) {
    %c0_i32 = arith.constant 0 : i32
    %c0_i32_0 = arith.constant 0 : i32
    %c0_i32_1 = arith.constant 0 : i32
    return %c0_i32, %c0_i32_0 : i32, i32
  }
}

module attributes {stable_mosaic.version = 11 : i64} {
  func.func @_bn_act_mm_stats_kernel(%arg0: i32, %arg1: memref<128x128xf32, #tpu.memory_space<vmem>>, %arg2: memref<2x128xf32, #tpu.memory_space<vmem>>, %arg3: memref<128x64xf32, #tpu.memory_space<vmem>>, %arg4: memref<128x64xf32, #tpu.memory_space<vmem>>, %arg5: memref<2x64xf32, #tpu.memory_space<vmem>>) attributes {dimension_semantics = [#tpu.dimension_semantics<arbitrary>], iteration_bounds = array<i64: 2>, scalar_prefetch = 0 : i64, scratch_operands = 0 : i64, tpu.core_type = #tpu.core_type<tc>, window_params = [{transform_indices = @transform_0, window_bounds = array<i64: 128, 128>}, {pipeline_mode = #tpu.pipeline_mode<synchronous>, transform_indices = @transform_1, window_bounds = array<i64: 2, 128>}, {pipeline_mode = #tpu.pipeline_mode<synchronous>, transform_indices = @transform_2, window_bounds = array<i64: 128, 64>}, {transform_indices = @transform_3, window_bounds = array<i64: 128, 64>}, {pipeline_mode = #tpu.pipeline_mode<synchronous>, transform_indices = @transform_4, window_bounds = array<i64: 2, 64>}]} {
    %c0 = arith.constant 0 : index
    %c0_0 = arith.constant 0 : index
    %0 = vector.load %arg1[%c0, %c0_0] : memref<128x128xf32, #tpu.memory_space<vmem>>, vector<128x128xf32>
    %c0_1 = arith.constant 0 : index
    %c0_2 = arith.constant 0 : index
    %1 = vector.load %arg2[%c0_1, %c0_2] : memref<2x128xf32, #tpu.memory_space<vmem>>, vector<1x128xf32>
    %2 = vector.broadcast %1 : vector<1x128xf32> to vector<128x128xf32>
    %3 = arith.mulf %0, %2 : vector<128x128xf32>
    %c1 = arith.constant 1 : index
    %c0_3 = arith.constant 0 : index
    %4 = vector.load %arg2[%c1, %c0_3] : memref<2x128xf32, #tpu.memory_space<vmem>>, vector<1x128xf32>
    %5 = vector.broadcast %4 : vector<1x128xf32> to vector<128x128xf32>
    %6 = arith.addf %3, %5 : vector<128x128xf32>
    %cst = arith.constant 0.000000e+00 : f32
    %7 = vector.broadcast %cst : f32 to vector<128x128xf32>
    %8 = arith.cmpf ogt, %6, %7 : vector<128x128xf32>
    %cst_4 = arith.constant 0.00999999977 : f32
    %9 = vector.broadcast %cst_4 : f32 to vector<128x128xf32>
    %10 = arith.mulf %9, %6 : vector<128x128xf32>
    %11 = arith.select %8, %6, %10 : vector<128x128xi1>, vector<128x128xf32>
    %c128_i32 = arith.constant 128 : i32
    %12 = arith.muli %arg0, %c128_i32 : i32
    %13 = tpu.iota {dimensions = array<i32: 0>} : vector<128x1xi32>
    %14 = vector.broadcast %12 : i32 to vector<128x1xi32>
    %15 = arith.addi %14, %13 : vector<128x1xi32>
    %c200_i32 = arith.constant 200 : i32
    %16 = vector.broadcast %c200_i32 : i32 to vector<128x1xi32>
    %17 = arith.cmpi slt, %15, %16 : vector<128x1xi32>
    %cst_5 = arith.constant 0.000000e+00 : f32
    %18 = vector.shape_cast %17 : vector<128x1xi1> to vector<128x1xi1>
    %19 = vector.broadcast %18 : vector<128x1xi1> to vector<128x128xi1>
    %20 = vector.broadcast %cst_5 : f32 to vector<128x128xf32>
    %21 = arith.select %19, %11, %20 : vector<128x128xi1>, vector<128x128xf32>
    %c0_6 = arith.constant 0 : index
    %c0_7 = arith.constant 0 : index
    %22 = vector.load %arg3[%c0_6, %c0_7] : memref<128x64xf32, #tpu.memory_space<vmem>>, vector<128x64xf32>
    %cst_8 = arith.constant dense<0.000000e+00> : vector<128x64xf32>
    %23 = tpu.matmul %21, %22, %cst_8 {dimension_numbers = #tpu.dot_dimension_numbers<[1], [0], [0], [1], [0, 0, 1, 1], [], []>} : vector<128x128xf32>, vector<128x64xf32>, vector<128x64xf32> -> vector<128x64xf32>
    %c0_9 = arith.constant 0 : index
    %c0_10 = arith.constant 0 : index
    %24 = vector.load %arg4[%c0_9, %c0_10] : memref<128x64xf32, #tpu.memory_space<vmem>>, vector<128x64xf32>
    tpu.vector_store %arg4[%c0_9, %c0_10], %23 {strides = array<i32>} : memref<128x64xf32, #tpu.memory_space<vmem>>, vector<128x64xf32>,
    %c0_i32 = arith.constant 0 : i32
    %25 = arith.cmpi eq, %arg0, %c0_i32 : i32
    %26 = arith.extui %25 : i1 to i32
    %c0_i32_11 = arith.constant 0 : i32
    %27 = arith.cmpi ne, %26, %c0_i32_11 : i32
    scf.if %27 {
      %cst_22 = arith.constant 0.000000e+00 : f32
      %39 = vector.broadcast %cst_22 : f32 to vector<2x64xf32>
      %c0_23 = arith.constant 0 : index
      %c0_24 = arith.constant 0 : index
      %40 = vector.load %arg5[%c0_23, %c0_24] : memref<2x64xf32, #tpu.memory_space<vmem>>, vector<2x64xf32>
      tpu.vector_store %arg5[%c0_23, %c0_24], %39 {strides = array<i32>} : memref<2x64xf32, #tpu.memory_space<vmem>>, vector<2x64xf32>,
    } else {
    }
    %c0_12 = arith.constant 0 : index
    %c0_13 = arith.constant 0 : index
    %28 = vector.load %arg5[%c0_12, %c0_13] : memref<2x64xf32, #tpu.memory_space<vmem>>, vector<1x64xf32>
    %cst_14 = arith.constant dense<0.000000e+00> : vector<64xf32>
    %29 = vector.multi_reduction <add>, %23, %cst_14 [0] : vector<128x64xf32> to vector<64xf32>
    %30 = vector.shape_cast %29 : vector<64xf32> to vector<1x64xf32>
    %31 = arith.addf %28, %30 : vector<1x64xf32>
    %c0_15 = arith.constant 0 : index
    %c0_16 = arith.constant 0 : index
    %32 = vector.load %arg5[%c0_15, %c0_16] : memref<2x64xf32, #tpu.memory_space<vmem>>, vector<1x64xf32>
    tpu.vector_store %arg5[%c0_15, %c0_16], %31 {strides = array<i32>} : memref<2x64xf32, #tpu.memory_space<vmem>>, vector<1x64xf32>,
    %c1_17 = arith.constant 1 : index
    %c0_18 = arith.constant 0 : index
    %33 = vector.load %arg5[%c1_17, %c0_18] : memref<2x64xf32, #tpu.memory_space<vmem>>, vector<1x64xf32>
    %34 = arith.mulf %23, %23 : vector<128x64xf32>
    %cst_19 = arith.constant dense<0.000000e+00> : vector<64xf32>
    %35 = vector.multi_reduction <add>, %34, %cst_19 [0] : vector<128x64xf32> to vector<64xf32>
    %36 = vector.shape_cast %35 : vector<64xf32> to vector<1x64xf32>
    %37 = arith.addf %33, %36 : vector<1x64xf32>
    %c1_20 = arith.constant 1 : index
    %c0_21 = arith.constant 0 : index
    %38 = vector.load %arg5[%c1_20, %c0_21] : memref<2x64xf32, #tpu.memory_space<vmem>>, vector<1x64xf32>
    tpu.vector_store %arg5[%c1_20, %c0_21], %37 {strides = array<i32>} : memref<2x64xf32, #tpu.memory_space<vmem>>, vector<1x64xf32>,
    return
  }
  func.func @transform_0(%arg0: i32) -> (i32, i32) {
    %c0_i32 = arith.constant 0 : i32
    %c0_i32_0 = arith.constant 0 : i32
    return %arg0, %c0_i32 : i32, i32
  }
  func.func @transform_1(%arg0: i32) -> (i32, i32) {
    %c0_i32 = arith.constant 0 : i32
    %c0_i32_0 = arith.constant 0 : i32
    %c0_i32_1 = arith.constant 0 : i32
    return %c0_i32, %c0_i32_0 : i32, i32
  }
  func.func @transform_2(%arg0: i32) -> (i32, i32) {
    %c0_i32 = arith.constant 0 : i32
    %c0_i32_0 = arith.constant 0 : i32
    %c0_i32_1 = arith.constant 0 : i32
    return %c0_i32, %c0_i32_0 : i32, i32
  }
  func.func @transform_3(%arg0: i32) -> (i32, i32) {
    %c0_i32 = arith.constant 0 : i32
    %c0_i32_0 = arith.constant 0 : i32
    return %arg0, %c0_i32 : i32, i32
  }
  func.func @transform_4(%arg0: i32) -> (i32, i32) {
    %c0_i32 = arith.constant 0 : i32
    %c0_i32_0 = arith.constant 0 : i32
    %c0_i32_1 = arith.constant 0 : i32
    return %c0_i32, %c0_i32_0 : i32, i32
  }
}

module attributes {stable_mosaic.version = 11 : i64} {
  func.func @_bn_act_mm_stats_kernel(%arg0: i32, %arg1: memref<128x64xf32, #tpu.memory_space<vmem>>, %arg2: memref<2x64xf32, #tpu.memory_space<vmem>>, %arg3: memref<64x16xf32, #tpu.memory_space<vmem>>, %arg4: memref<128x16xf32, #tpu.memory_space<vmem>>, %arg5: memref<2x16xf32, #tpu.memory_space<vmem>>) attributes {dimension_semantics = [#tpu.dimension_semantics<arbitrary>], iteration_bounds = array<i64: 2>, scalar_prefetch = 0 : i64, scratch_operands = 0 : i64, tpu.core_type = #tpu.core_type<tc>, window_params = [{transform_indices = @transform_0, window_bounds = array<i64: 128, 64>}, {pipeline_mode = #tpu.pipeline_mode<synchronous>, transform_indices = @transform_1, window_bounds = array<i64: 2, 64>}, {pipeline_mode = #tpu.pipeline_mode<synchronous>, transform_indices = @transform_2, window_bounds = array<i64: 64, 16>}, {transform_indices = @transform_3, window_bounds = array<i64: 128, 16>}, {pipeline_mode = #tpu.pipeline_mode<synchronous>, transform_indices = @transform_4, window_bounds = array<i64: 2, 16>}]} {
    %c0 = arith.constant 0 : index
    %c0_0 = arith.constant 0 : index
    %0 = vector.load %arg1[%c0, %c0_0] : memref<128x64xf32, #tpu.memory_space<vmem>>, vector<128x64xf32>
    %c0_1 = arith.constant 0 : index
    %c0_2 = arith.constant 0 : index
    %1 = vector.load %arg2[%c0_1, %c0_2] : memref<2x64xf32, #tpu.memory_space<vmem>>, vector<1x64xf32>
    %2 = vector.broadcast %1 : vector<1x64xf32> to vector<128x64xf32>
    %3 = arith.mulf %0, %2 : vector<128x64xf32>
    %c1 = arith.constant 1 : index
    %c0_3 = arith.constant 0 : index
    %4 = vector.load %arg2[%c1, %c0_3] : memref<2x64xf32, #tpu.memory_space<vmem>>, vector<1x64xf32>
    %5 = vector.broadcast %4 : vector<1x64xf32> to vector<128x64xf32>
    %6 = arith.addf %3, %5 : vector<128x64xf32>
    %cst = arith.constant 0.000000e+00 : f32
    %7 = vector.broadcast %cst : f32 to vector<128x64xf32>
    %8 = arith.cmpf ogt, %6, %7 : vector<128x64xf32>
    %cst_4 = arith.constant 0.00999999977 : f32
    %9 = vector.broadcast %cst_4 : f32 to vector<128x64xf32>
    %10 = arith.mulf %9, %6 : vector<128x64xf32>
    %11 = arith.select %8, %6, %10 : vector<128x64xi1>, vector<128x64xf32>
    %c128_i32 = arith.constant 128 : i32
    %12 = arith.muli %arg0, %c128_i32 : i32
    %13 = tpu.iota {dimensions = array<i32: 0>} : vector<128x1xi32>
    %14 = vector.broadcast %12 : i32 to vector<128x1xi32>
    %15 = arith.addi %14, %13 : vector<128x1xi32>
    %c200_i32 = arith.constant 200 : i32
    %16 = vector.broadcast %c200_i32 : i32 to vector<128x1xi32>
    %17 = arith.cmpi slt, %15, %16 : vector<128x1xi32>
    %cst_5 = arith.constant 0.000000e+00 : f32
    %18 = vector.shape_cast %17 : vector<128x1xi1> to vector<128x1xi1>
    %19 = vector.broadcast %18 : vector<128x1xi1> to vector<128x64xi1>
    %20 = vector.broadcast %cst_5 : f32 to vector<128x64xf32>
    %21 = arith.select %19, %11, %20 : vector<128x64xi1>, vector<128x64xf32>
    %c0_6 = arith.constant 0 : index
    %c0_7 = arith.constant 0 : index
    %22 = vector.load %arg3[%c0_6, %c0_7] : memref<64x16xf32, #tpu.memory_space<vmem>>, vector<64x16xf32>
    %cst_8 = arith.constant dense<0.000000e+00> : vector<128x16xf32>
    %23 = tpu.matmul %21, %22, %cst_8 {dimension_numbers = #tpu.dot_dimension_numbers<[1], [0], [0], [1], [0, 0, 1, 1], [], []>} : vector<128x64xf32>, vector<64x16xf32>, vector<128x16xf32> -> vector<128x16xf32>
    %c0_9 = arith.constant 0 : index
    %c0_10 = arith.constant 0 : index
    %24 = vector.load %arg4[%c0_9, %c0_10] : memref<128x16xf32, #tpu.memory_space<vmem>>, vector<128x16xf32>
    tpu.vector_store %arg4[%c0_9, %c0_10], %23 {strides = array<i32>} : memref<128x16xf32, #tpu.memory_space<vmem>>, vector<128x16xf32>,
    %c0_i32 = arith.constant 0 : i32
    %25 = arith.cmpi eq, %arg0, %c0_i32 : i32
    %26 = arith.extui %25 : i1 to i32
    %c0_i32_11 = arith.constant 0 : i32
    %27 = arith.cmpi ne, %26, %c0_i32_11 : i32
    scf.if %27 {
      %cst_22 = arith.constant 0.000000e+00 : f32
      %39 = vector.broadcast %cst_22 : f32 to vector<2x16xf32>
      %c0_23 = arith.constant 0 : index
      %c0_24 = arith.constant 0 : index
      %40 = vector.load %arg5[%c0_23, %c0_24] : memref<2x16xf32, #tpu.memory_space<vmem>>, vector<2x16xf32>
      tpu.vector_store %arg5[%c0_23, %c0_24], %39 {strides = array<i32>} : memref<2x16xf32, #tpu.memory_space<vmem>>, vector<2x16xf32>,
    } else {
    }
    %c0_12 = arith.constant 0 : index
    %c0_13 = arith.constant 0 : index
    %28 = vector.load %arg5[%c0_12, %c0_13] : memref<2x16xf32, #tpu.memory_space<vmem>>, vector<1x16xf32>
    %cst_14 = arith.constant dense<0.000000e+00> : vector<16xf32>
    %29 = vector.multi_reduction <add>, %23, %cst_14 [0] : vector<128x16xf32> to vector<16xf32>
    %30 = vector.shape_cast %29 : vector<16xf32> to vector<1x16xf32>
    %31 = arith.addf %28, %30 : vector<1x16xf32>
    %c0_15 = arith.constant 0 : index
    %c0_16 = arith.constant 0 : index
    %32 = vector.load %arg5[%c0_15, %c0_16] : memref<2x16xf32, #tpu.memory_space<vmem>>, vector<1x16xf32>
    tpu.vector_store %arg5[%c0_15, %c0_16], %31 {strides = array<i32>} : memref<2x16xf32, #tpu.memory_space<vmem>>, vector<1x16xf32>,
    %c1_17 = arith.constant 1 : index
    %c0_18 = arith.constant 0 : index
    %33 = vector.load %arg5[%c1_17, %c0_18] : memref<2x16xf32, #tpu.memory_space<vmem>>, vector<1x16xf32>
    %34 = arith.mulf %23, %23 : vector<128x16xf32>
    %cst_19 = arith.constant dense<0.000000e+00> : vector<16xf32>
    %35 = vector.multi_reduction <add>, %34, %cst_19 [0] : vector<128x16xf32> to vector<16xf32>
    %36 = vector.shape_cast %35 : vector<16xf32> to vector<1x16xf32>
    %37 = arith.addf %33, %36 : vector<1x16xf32>
    %c1_20 = arith.constant 1 : index
    %c0_21 = arith.constant 0 : index
    %38 = vector.load %arg5[%c1_20, %c0_21] : memref<2x16xf32, #tpu.memory_space<vmem>>, vector<1x16xf32>
    tpu.vector_store %arg5[%c1_20, %c0_21], %37 {strides = array<i32>} : memref<2x16xf32, #tpu.memory_space<vmem>>, vector<1x16xf32>,
    return
  }
  func.func @transform_0(%arg0: i32) -> (i32, i32) {
    %c0_i32 = arith.constant 0 : i32
    %c0_i32_0 = arith.constant 0 : i32
    return %arg0, %c0_i32 : i32, i32
  }
  func.func @transform_1(%arg0: i32) -> (i32, i32) {
    %c0_i32 = arith.constant 0 : i32
    %c0_i32_0 = arith.constant 0 : i32
    %c0_i32_1 = arith.constant 0 : i32
    return %c0_i32, %c0_i32_0 : i32, i32
  }
  func.func @transform_2(%arg0: i32) -> (i32, i32) {
    %c0_i32 = arith.constant 0 : i32
    %c0_i32_0 = arith.constant 0 : i32
    %c0_i32_1 = arith.constant 0 : i32
    return %c0_i32, %c0_i32_0 : i32, i32
  }
  func.func @transform_3(%arg0: i32) -> (i32, i32) {
    %c0_i32 = arith.constant 0 : i32
    %c0_i32_0 = arith.constant 0 : i32
    return %arg0, %c0_i32 : i32, i32
  }
  func.func @transform_4(%arg0: i32) -> (i32, i32) {
    %c0_i32 = arith.constant 0 : i32
    %c0_i32_0 = arith.constant 0 : i32
    %c0_i32_1 = arith.constant 0 : i32
    return %c0_i32, %c0_i32_0 : i32, i32
  }
}

module attributes {stable_mosaic.version = 11 : i64} {
  func.func @_bn_act_head_kernel(%arg0: i32, %arg1: memref<128x16xf32, #tpu.memory_space<vmem>>, %arg2: memref<2x16xf32, #tpu.memory_space<vmem>>, %arg3: memref<1x16xf32, #tpu.memory_space<vmem>>, %arg4: memref<1x1xf32, #tpu.memory_space<vmem>>, %arg5: memref<128x1xf32, #tpu.memory_space<vmem>>) attributes {dimension_semantics = [#tpu.dimension_semantics<parallel>], iteration_bounds = array<i64: 2>, scalar_prefetch = 0 : i64, scratch_operands = 0 : i64, tpu.core_type = #tpu.core_type<tc>, window_params = [{transform_indices = @transform_0, window_bounds = array<i64: 128, 16>}, {pipeline_mode = #tpu.pipeline_mode<synchronous>, transform_indices = @transform_1, window_bounds = array<i64: 2, 16>}, {pipeline_mode = #tpu.pipeline_mode<synchronous>, transform_indices = @transform_2, window_bounds = array<i64: 1, 16>}, {pipeline_mode = #tpu.pipeline_mode<synchronous>, transform_indices = @transform_3, window_bounds = array<i64: 1, 1>}, {transform_indices = @transform_4, window_bounds = array<i64: 128, 1>}]} {
    %c0 = arith.constant 0 : index
    %c0_0 = arith.constant 0 : index
    %0 = vector.load %arg1[%c0, %c0_0] : memref<128x16xf32, #tpu.memory_space<vmem>>, vector<128x16xf32>
    %c0_1 = arith.constant 0 : index
    %c0_2 = arith.constant 0 : index
    %1 = vector.load %arg2[%c0_1, %c0_2] : memref<2x16xf32, #tpu.memory_space<vmem>>, vector<1x16xf32>
    %2 = vector.broadcast %1 : vector<1x16xf32> to vector<128x16xf32>
    %3 = arith.mulf %0, %2 : vector<128x16xf32>
    %c1 = arith.constant 1 : index
    %c0_3 = arith.constant 0 : index
    %4 = vector.load %arg2[%c1, %c0_3] : memref<2x16xf32, #tpu.memory_space<vmem>>, vector<1x16xf32>
    %5 = vector.broadcast %4 : vector<1x16xf32> to vector<128x16xf32>
    %6 = arith.addf %3, %5 : vector<128x16xf32>
    %cst = arith.constant 0.000000e+00 : f32
    %7 = vector.broadcast %cst : f32 to vector<128x16xf32>
    %8 = arith.cmpf ogt, %6, %7 : vector<128x16xf32>
    %cst_4 = arith.constant 0.00999999977 : f32
    %9 = vector.broadcast %cst_4 : f32 to vector<128x16xf32>
    %10 = arith.mulf %9, %6 : vector<128x16xf32>
    %11 = arith.select %8, %6, %10 : vector<128x16xi1>, vector<128x16xf32>
    %c0_5 = arith.constant 0 : index
    %c0_6 = arith.constant 0 : index
    %12 = vector.load %arg3[%c0_5, %c0_6] : memref<1x16xf32, #tpu.memory_space<vmem>>, vector<1x16xf32>
    %13 = vector.broadcast %12 : vector<1x16xf32> to vector<128x16xf32>
    %14 = arith.mulf %11, %13 : vector<128x16xf32>
    %cst_7 = arith.constant dense<0.000000e+00> : vector<128xf32>
    %15 = vector.multi_reduction <add>, %14, %cst_7 [1] : vector<128x16xf32> to vector<128xf32>
    %16 = vector.shape_cast %15 : vector<128xf32> to vector<128x1xf32>
    %c0_8 = arith.constant 0 : index
    %c0_9 = arith.constant 0 : index
    %17 = vector.load %arg4[%c0_8, %c0_9] : memref<1x1xf32, #tpu.memory_space<vmem>>, vector<1x1xf32>
    %18 = vector.broadcast %17 : vector<1x1xf32> to vector<128x1xf32>
    %19 = arith.addf %16, %18 : vector<128x1xf32>
    %20 = arith.negf %19 : vector<128x1xf32>
    %21 = math.exp %20 : vector<128x1xf32>
    %cst_10 = arith.constant 1.000000e+00 : f32
    %22 = vector.broadcast %cst_10 : f32 to vector<128x1xf32>
    %23 = arith.addf %22, %21 : vector<128x1xf32>
    %24 = arith.divf %22, %23 : vector<128x1xf32>
    %c0_11 = arith.constant 0 : index
    %c0_12 = arith.constant 0 : index
    %25 = vector.load %arg5[%c0_11, %c0_12] : memref<128x1xf32, #tpu.memory_space<vmem>>, vector<128x1xf32>
    tpu.vector_store %arg5[%c0_11, %c0_12], %24 {strides = array<i32>} : memref<128x1xf32, #tpu.memory_space<vmem>>, vector<128x1xf32>,
    return
  }
  func.func @transform_0(%arg0: i32) -> (i32, i32) {
    %c0_i32 = arith.constant 0 : i32
    %c0_i32_0 = arith.constant 0 : i32
    return %arg0, %c0_i32 : i32, i32
  }
  func.func @transform_1(%arg0: i32) -> (i32, i32) {
    %c0_i32 = arith.constant 0 : i32
    %c0_i32_0 = arith.constant 0 : i32
    %c0_i32_1 = arith.constant 0 : i32
    return %c0_i32, %c0_i32_0 : i32, i32
  }
  func.func @transform_2(%arg0: i32) -> (i32, i32) {
    %c0_i32 = arith.constant 0 : i32
    %c0_i32_0 = arith.constant 0 : i32
    %c0_i32_1 = arith.constant 0 : i32
    return %c0_i32, %c0_i32_0 : i32, i32
  }
  func.func @transform_3(%arg0: i32) -> (i32, i32) {
    %c0_i32 = arith.constant 0 : i32
    %c0_i32_0 = arith.constant 0 : i32
    %c0_i32_1 = arith.constant 0 : i32
    return %c0_i32, %c0_i32_0 : i32, i32
  }
  func.func @transform_4(%arg0: i32) -> (i32, i32) {
    %c0_i32 = arith.constant 0 : i32
    %c0_i32_0 = arith.constant 0 : i32
    return %arg0, %c0_i32 : i32, i32
  }
}

</mosaic_0001>

<llo_original>
// kernel: downstream_forward.4
$region0: #{downstream_forward.4}
  #allocation0 [shape = 'u32[]', space=smem, size = 0x4, offset = 0x4, fixed_abs, tag = 'smem constant byte address 0x4 - core index']
  #allocation1 [shape = 'u32[72,128]{1,0:T(1,128)}', space=vmem, size = 0x9000, scoped, tag = 'internal scratch']
  %s0 = inlined_call_operand.vmem [shape: f32[256,142], index: 0, kind: input, shape index: {}]
  %s1 = inlined_call_operand.vmem [shape: f32[142,128], index: 1, kind: input, shape index: {}]
  %s2 = inlined_call_operand.vmem [shape: f32[256,128], index: 2, kind: output, shape index: {0}]
  %s3 = inlined_call_operand.vmem [shape: f32[2,128], index: 3, kind: output, shape index: {1}]
  %4 = xla_tuple %s2, %s3
  %s5 = sld [smem:[#allocation0]]
  $region53: #{downstream_forward.4} parent=0
    _
  %s7 = ssub.s32 1, %s5
  %s8 = scalar_select 0, %s7, %s5
  loop: start=0, step=1, limit=4
  $region2: #{downstream_forward.4} parent=0 // loop_pre_header
    _
  $region3: #{downstream_forward.4} parent=0 // loop_header
    %s10 = sphi 0, %s14
    %p11 = scmp.ge.s32.totalorder %s10, 4
    %s20 = sphi 0, %s22
    %s23 = sphi 0, %s20
    %s24 = sphi 0, %s23
    %s40 = sphi 0, %s24
    %s44 = sphi 0, %s44
    %s46 = sphi 0, %s44
    %s47 = sphi 0, %s46
    %s61 = sphi 0, %s47
    %s67 = sphi 0, %s69
    %s70 = sphi 0, %s67
    %s71 = sphi 0, %s70
    %s87 = sphi 0, %s71
    %s91 = sphi 0, %s91
    %s93 = sphi 0, %s91
    %s94 = sphi 0, %s93
    %s108 = sphi 0, %s94
  $region4: #{downstream_forward.4} parent=0 // loop_header_branch
    %13 = sbr.rel (%p11) target = $region8
  $region5: #{downstream_forward.4} parent=0 // loop_body
    %s15 = ssub.s32 %s10, 1
    %s16 = ssub.s32 %s10, 2
    %s17 = sadd.s32 %s10, 1
    %s18 = ssub.s32 %s10, %s17
    %p19 = scmp.eq.s32.totalorder %s18, 0
    %s21 = sadd.s32 %s20, 1
    %s22 = scalar_select %p19, %s20, %s21
    %p25 = pneg %p19
    %p26 = scmp.eq.s32.totalorder %s10, 1
    %p27 = por %p25, %p26
    %p28 = scmp.ne.s32.totalorder %s20, %s23
    %p29 = scmp.eq.s32.totalorder %s10, 0
    %p30 = por %p28, %p29
    %p31 = scmp.ne.s32.totalorder %s20, %s23
    %p32 = scmp.eq.s32.totalorder %s15, 1
    %p33 = por %p31, %p32
    %p34 = scmp.ne.s32.totalorder %s23, %s24
    %p35 = scmp.eq.s32.totalorder %s15, 0
    %p36 = por %p34, %p35
    %p37 = scmp.ne.s32.totalorder %s23, %s24
    %p38 = scmp.eq.s32.totalorder %s16, 1
    %p39 = por %p37, %p38
    %p41 = scmp.ne.s32.totalorder %s24, %s40
    %p42 = scmp.eq.s32.totalorder %s16, 0
    %p43 = por %p41, %p42
    %s45 = sadd.s32 %s44, 1
    %p48 = scmp.eq.s32.totalorder %s10, 1
    %p49 = scmp.ne.s32.totalorder %s44, %s46
    %p50 = scmp.eq.s32.totalorder %s10, 0
    %p51 = por %p49, %p50
    %p52 = scmp.ne.s32.totalorder %s44, %s46
    %p53 = scmp.eq.s32.totalorder %s15, 1
    %p54 = por %p52, %p53
    %p55 = scmp.ne.s32.totalorder %s46, %s47
    %p56 = scmp.eq.s32.totalorder %s15, 0
    %p57 = por %p55, %p56
    %p58 = scmp.ne.s32.totalorder %s46, %s47
    %p59 = scmp.eq.s32.totalorder %s16, 1
    %p60 = por %p58, %p59
    %p62 = scmp.ne.s32.totalorder %s47, %s61
    %p63 = scmp.eq.s32.totalorder %s16, 0
    %p64 = por %p62, %p63
    %s65 = ssub.s32 %s10, %s17
    %p66 = scmp.eq.s32.totalorder %s65, 0
    %s68 = sadd.s32 %s67, 1
    %s69 = scalar_select %p66, %s67, %s68
    %p72 = pneg %p66
    %p73 = scmp.eq.s32.totalorder %s10, 1
    %p74 = por %p72, %p73
    %p75 = scmp.ne.s32.totalorder %s67, %s70
    %p76 = scmp.eq.s32.totalorder %s10, 0
    %p77 = por %p75, %p76
    %p78 = scmp.ne.s32.totalorder %s67, %s70
    %p79 = scmp.eq.s32.totalorder %s15, 1
    %p80 = por %p78, %p79
    %p81 = scmp.ne.s32.totalorder %s70, %s71
    %p82 = scmp.eq.s32.totalorder %s15, 0
    %p83 = por %p81, %p82
    %p84 = scmp.ne.s32.totalorder %s70, %s71
    %p85 = scmp.eq.s32.totalorder %s16, 1
    %p86 = por %p84, %p85
    %p88 = scmp.ne.s32.totalorder %s71, %s87
    %p89 = scmp.eq.s32.totalorder %s16, 0
    %p90 = por %p88, %p89
    %s92 = sadd.s32 %s91, 1
    %p95 = scmp.eq.s32.totalorder %s10, 1
    %p96 = scmp.ne.s32.totalorder %s91, %s93
    %p97 = scmp.eq.s32.totalorder %s10, 0
    %p98 = por %p96, %p97
    %p99 = scmp.ne.s32.totalorder %s91, %s93
    %p100 = scmp.eq.s32.totalorder %s15, 1
    %p101 = por %p99, %p100
    %p102 = scmp.ne.s32.totalorder %s93, %s94
    %p103 = scmp.eq.s32.totalorder %s15, 0
    %p104 = por %p102, %p103
    %p105 = scmp.ne.s32.totalorder %s93, %s94
    %p106 = scmp.eq.s32.totalorder %s16, 1
    %p107 = por %p105, %p106
    %p109 = scmp.ne.s32.totalorder %s94, %s108
    %p110 = scmp.eq.s32.totalorder %s16, 0
    %p111 = por %p109, %p110
    %p112 = scmp.le.s32.totalorder 1, %s10
    %p113 = scmp.lt.s32.totalorder %s10, 3
    %p114 = pnand %p112, %p113
    %p115 = pneg %p114
    // Predicated region
    $region9: #{downstream_forward.4} parent=5 // pred_check
      _
    $region10: #{downstream_forward.4} parent=5 // pred_check_branch
      %117 = sbr.rel (%p114) target = $region12
    $region11: #{downstream_forward.4} parent=5 // pred_region
      %s118 = ssub.s32 %s10, 1
      // Predicated region
      $region13: #{downstream_forward.4} parent=11 // pred_check
        %p119 = pneg %p57
      $region14: #{downstream_forward.4} parent=11 // pred_check_branch
        %121 = sbr.rel (%p119) target = $region16
      $region15: #{downstream_forward.4} parent=11 // pred_region
        _
      $region16: #{downstream_forward.4} parent=11 // pred_fallthru
        _
    $region12: #{downstream_forward.4} parent=5 // pred_fallthru
      _
    %p122 = scmp.lt.s32.totalorder %s10, 2
    // Predicated region
    $region17: #{downstream_forward.4} parent=5 // pred_check
      %p123 = pneg %p122
    $region18: #{downstream_forward.4} parent=5 // pred_check_branch
      %125 = sbr.rel (%p123) target = $region20
    $region19: #{downstream_forward.4} parent=5 // pred_region
      // Predicated region
      $region21: #{downstream_forward.4} parent=19 // pred_check
        %p126 = pneg %p30
      $region22: #{downstream_forward.4} parent=19 // pred_check_branch
        %128 = sbr.rel (%p126) target = $region24
      $region23: #{downstream_forward.4} parent=19 // pred_region
        %s129 = smul.u32 16, %s10
        %p130 = scmp.lt.s32.totalorder %s129, 31
        %s131 = scalar_select %p130, %s129, 31
        %s132 = smul.addr %s131, 2
        %s133 = smul.addr %s132, 8
        %s134 = scalar_lea.vmem %s0, %s133
        %s135 = smul.u32 16, %s10
      $region24: #{downstream_forward.4} parent=19 // pred_fallthru
        _
    $region20: #{downstream_forward.4} parent=5 // pred_fallthru
      _
    %p136 = scmp.le.s32.totalorder 1, %s10
    %p137 = scmp.lt.s32.totalorder %s10, 3
    %p138 = pnand %p136, %p137
    %p139 = pneg %p138
    // Predicated region
    $region25: #{downstream_forward.4} parent=5 // pred_check
      _
    $region26: #{downstream_forward.4} parent=5 // pred_check_branch
      %141 = sbr.rel (%p138) target = $region28
    $region27: #{downstream_forward.4} parent=5 // pred_region
      %s142 = ssub.s32 %s10, 1
      %s143 = smul.u32 16, %s15
      %p144 = scmp.lt.s32.totalorder %s143, 31
      %s145 = scalar_select %p144, %s143, 31
      %s146 = smul.addr %s145, 2
      %s147 = smul.addr %s146, 8
      %s148 = scalar_lea.vmem %s0, %s147
      %p149 = pneg %p36
      %p150 = pneg %p33
      %p151 = pneg %p57
      %p152 = pneg %p54
      %p153 = pneg %p83
      %p154 = pneg %p80
      %s155 = smul.u32 16, %s15
      %p156 = scmp.lt.s32.totalorder %s155, 31
      %s157 = scalar_select %p156, %s155, 31
      %s158 = smul.addr %s157, 8
      %s159 = scalar_lea.vmem %s2, %s158
      %p160 = pneg %p104
      %p161 = pneg %p101
      %s162 = smul.u32 16, %s15
      %p163 = scmp.lt.s32.totalorder %s162, 31
      %s164 = scalar_select %p163, %s162, 31
      %s165 = smul.addr %s164, 2
      %s166 = smul.addr %s165, 8
      %s167 = scalar_lea.vmem %s0, %s166
      %s168 = smul.u32 16, %s15
      %s169 = smul.u32 16, %s15
      %p170 = scmp.lt.s32.totalorder %s169, 31
      %s171 = scalar_select %p170, %s169, 31
      %s172 = smul.addr %s171, 8
      %s173 = scalar_lea.vmem %s2, %s172
      %s174 = smul.u32 16, %s15
      %v175 = vld [vmem:[%s167] sm:$0xff]
      %v176 = vld [vmem:[%s167 + $0x8] sm:$0xff]
      %v177 = vld [vmem:[%s167 + $0x10] sm:$0xff]
      %v178 = vld [vmem:[%s167 + $0x18] sm:$0xff]
      %v179 = vld [vmem:[%s167 + $0x20] sm:$0xff]
      %v180 = vld [vmem:[%s167 + $0x28] sm:$0xff]
      %v181 = vld [vmem:[%s167 + $0x30] sm:$0xff]
      %v182 = vld [vmem:[%s167 + $0x38] sm:$0xff]
      %v183 = vld [vmem:[%s167 + $0x40] sm:$0xff]
      %v184 = vld [vmem:[%s167 + $0x48] sm:$0xff]
      %v185 = vld [vmem:[%s167 + $0x50] sm:$0xff]
      %v186 = vld [vmem:[%s167 + $0x58] sm:$0xff]
      %v187 = vld [vmem:[%s167 + $0x60] sm:$0xff]
      %v188 = vld [vmem:[%s167 + $0x68] sm:$0xff]
      %v189 = vld [vmem:[%s167 + $0x70] sm:$0xff]
      %v190 = vld [vmem:[%s167 + $0x78] sm:$0xff]
      %v191 = vld [vmem:[%s167 + $0x80] sm:$0xff]
      %v192 = vld [vmem:[%s167 + $0x88] sm:$0xff]
      %v193 = vld [vmem:[%s167 + $0x90] sm:$0xff]
      %v194 = vld [vmem:[%s167 + $0x98] sm:$0xff]
      %v195 = vld [vmem:[%s167 + $0xa0] sm:$0xff]
      %v196 = vld [vmem:[%s167 + $0xa8] sm:$0xff]
      %v197 = vld [vmem:[%s167 + $0xb0] sm:$0xff]
      %v198 = vld [vmem:[%s167 + $0xb8] sm:$0xff]
      %v199 = vld [vmem:[%s167 + $0xc0] sm:$0xff]
      %v200 = vld [vmem:[%s167 + $0xc8] sm:$0xff]
      %v201 = vld [vmem:[%s167 + $0xd0] sm:$0xff]
      %v202 = vld [vmem:[%s167 + $0xd8] sm:$0xff]
      %v203 = vld [vmem:[%s167 + $0xe0] sm:$0xff]
      %v204 = vld [vmem:[%s167 + $0xe8] sm:$0xff]
      %v205 = vld [vmem:[%s167 + $0xf0] sm:$0xff]
      %v206 = vld [vmem:[%s167 + $0xf8] sm:$0xff]
      %v207 = vld [vmem:[%s1] sm:$0xff]
      %v208 = vld [vmem:[%s1 + $0x8] sm:$0xff]
      %v209 = vld [vmem:[%s1 + $0x10] sm:$0xff]
      %v210 = vld [vmem:[%s1 + $0x18] sm:$0xff]
      %v211 = vld [vmem:[%s1 + $0x20] sm:$0xff]
      %v212 = vld [vmem:[%s1 + $0x28] sm:$0xff]
      %v213 = vld [vmem:[%s1 + $0x30] sm:$0xff]
      %v214 = vld [vmem:[%s1 + $0x38] sm:$0xff]
      %v215 = vld [vmem:[%s1 + $0x40] sm:$0xff]
      %v216 = vld [vmem:[%s1 + $0x48] sm:$0xff]
      %v217 = vld [vmem:[%s1 + $0x50] sm:$0xff]
      %v218 = vld [vmem:[%s1 + $0x58] sm:$0xff]
      %v219 = vld [vmem:[%s1 + $0x60] sm:$0xff]
      %v220 = vld [vmem:[%s1 + $0x68] sm:$0xff]
      %v221 = vld [vmem:[%s1 + $0x70] sm:$0xff]
      %v222 = vld [vmem:[%s1 + $0x78] sm:$0xff]
      %v223 = vld [vmem:[%s1 + $0x80] sm:$0xff]
      %v224 = vld [vmem:[%s1 + $0x88] sm:$0x3f]
      %vm225 = vcmask 113664
      %v227 = vsel %vm225, %v176, 0
      %v230 = vsel %vm225, %v178, 0
      %v233 = vsel %vm225, %v180, 0
      %v236 = vsel %vm225, %v182, 0
      %v239 = vsel %vm225, %v184, 0
      %v242 = vsel %vm225, %v186, 0
      %v245 = vsel %vm225, %v188, 0
      %v248 = vsel %vm225, %v190, 0
      %v251 = vsel %vm225, %v192, 0
      %v254 = vsel %vm225, %v194, 0
      %v257 = vsel %vm225, %v196, 0
      %v260 = vsel %vm225, %v198, 0
      %v263 = vsel %vm225, %v200, 0
      %v266 = vsel %vm225, %v202, 0
      %v269 = vsel %vm225, %v204, 0
      %v272 = vsel %vm225, %v206, 0
      %vm274 = vcmask 1045504
      %v276 = vsel %vm274, %v224, 0
      %278 = vmatpush.msra.mxu0 %v222
      %279 = vmatpush.msra.mxu0 %v221
      %280 = vmatpush.msra.mxu0 %v220
      %281 = vmatpush.msra.mxu0 %v219
      %282 = vmatpush.msra.mxu0 %v218
      %283 = vmatpush.msra.mxu0 %v217
      %284 = vmatpush.msra.mxu0 %v216
      %285 = vmatpush.msra.mxu0 %v215
      %286 = vmatpush.msra.mxu0 %v214
      %287 = vmatpush.msra.mxu0 %v213
      %288 = vmatpush.msra.mxu0 %v212
      %289 = vmatpush.msra.mxu0 %v211
      %290 = vmatpush.msra.mxu0 %v210
      %291 = vmatpush.msra.mxu0 %v209
      %292 = vmatpush.msra.mxu0 %v208
      %293 = vmatpush.msra.mxu0 %v207
      %294 = vmatmul.f32.gmra.mxu0 %v175
      %v295 = vpop.f32.mrf.mxu0
      %v296 = vadd.f32 0.0, %v295
      %297 = vmatmul.f32.gmra.mxu0 %v177
      %v298 = vpop.f32.mrf.mxu0
      %v299 = vadd.f32 0.0, %v298
      %300 = vmatmul.f32.gmra.mxu0 %v179
      %v301 = vpop.f32.mrf.mxu0
      %v302 = vadd.f32 0.0, %v301
      %303 = vmatmul.f32.gmra.mxu0 %v181
      %v304 = vpop.f32.mrf.mxu0
      %v305 = vadd.f32 0.0, %v304
      %306 = vmatmul.f32.gmra.mxu0 %v183
      %v307 = vpop.f32.mrf.mxu0
      %v308 = vadd.f32 0.0, %v307
      %309 = vmatmul.f32.gmra.mxu0 %v185
      %v310 = vpop.f32.mrf.mxu0
      %v311 = vadd.f32 0.0, %v310
      %312 = vmatmul.f32.gmra.mxu0 %v187
      %v313 = vpop.f32.mrf.mxu0
      %v314 = vadd.f32 0.0, %v313
      %315 = vmatmul.f32.gmra.mxu0 %v189
      %v316 = vpop.f32.mrf.mxu0
      %v317 = vadd.f32 0.0, %v316
      %318 = vmatmul.f32.gmra.mxu0 %v191
      %v319 = vpop.f32.mrf.mxu0
      %v320 = vadd.f32 0.0, %v319
      %321 = vmatmul.f32.gmra.mxu0 %v193
      %v322 = vpop.f32.mrf.mxu0
      %v323 = vadd.f32 0.0, %v322
      %324 = vmatmul.f32.gmra.mxu0 %v195
      %v325 = vpop.f32.mrf.mxu0
      %v326 = vadd.f32 0.0, %v325
      %327 = vmatmul.f32.gmra.mxu0 %v197
      %v328 = vpop.f32.mrf.mxu0
      %v329 = vadd.f32 0.0, %v328
      %330 = vmatmul.f32.gmra.mxu0 %v199
      %v331 = vpop.f32.mrf.mxu0
      %v332 = vadd.f32 0.0, %v331
      %333 = vmatmul.f32.gmra.mxu0 %v201
      %v334 = vpop.f32.mrf.mxu0
      %v335 = vadd.f32 0.0, %v334
      %336 = vmatmul.f32.gmra.mxu0 %v203
      %v337 = vpop.f32.mrf.mxu0
      %v338 = vadd.f32 0.0, %v337
      %339 = vmatmul.f32.gmra.mxu0 %v205
      %v340 = vpop.f32.mrf.mxu0
      %v341 = vadd.f32 0.0, %v340
      %342 = vdwg.mxu0
      %343 = vmatpush.msra.mxu0 0.0
      %344 = vmatpush.msra.mxu0 0.0
      %345 = vmatpush.msra.mxu0 0.0
      %346 = vmatpush.msra.mxu0 0.0
      %347 = vmatpush.msra.mxu0 0.0
      %348 = vmatpush.msra.mxu0 0.0
      %349 = vmatpush.msra.mxu0 0.0
      %350 = vmatpush.msra.mxu0 0.0
      %351 = vmatpush.msra.mxu0 0.0
      %352 = vmatpush.msra.mxu0 0.0
      %353 = vmatpush.msra.mxu0 0.0
      %354 = vmatpush.msra.mxu0 0.0
      %355 = vmatpush.msra.mxu0 0.0
      %356 = vmatpush.msra.mxu0 0.0
      %357 = vmatpush.msra.mxu0 %v276
      %358 = vmatpush.msra.mxu0 %v223
      %359 = vmatmul.f32.gmra.mxu0 %v227
      %v360 = vpop.f32.mrf.mxu0
      %v361 = vadd.f32 %v296, %v360
      %362 = vmatmul.f32.gmra.mxu0 %v230
      %v363 = vpop.f32.mrf.mxu0
      %v364 = vadd.f32 %v299, %v363
      %365 = vmatmul.f32.gmra.mxu0 %v233
      %v366 = vpop.f32.mrf.mxu0
      %v367 = vadd.f32 %v302, %v366
      %368 = vmatmul.f32.gmra.mxu0 %v236
      %v369 = vpop.f32.mrf.mxu0
      %v370 = vadd.f32 %v305, %v369
      %371 = vmatmul.f32.gmra.mxu0 %v239
      %v372 = vpop.f32.mrf.mxu0
      %v373 = vadd.f32 %v308, %v372
      %374 = vmatmul.f32.gmra.mxu0 %v242
      %v375 = vpop.f32.mrf.mxu0
      %v376 = vadd.f32 %v311, %v375
      %377 = vmatmul.f32.gmra.mxu0 %v245
      %v378 = vpop.f32.mrf.mxu0
      %v379 = vadd.f32 %v314, %v378
      %380 = vmatmul.f32.gmra.mxu0 %v248
      %v381 = vpop.f32.mrf.mxu0
      %v382 = vadd.f32 %v317, %v381
      %383 = vmatmul.f32.gmra.mxu0 %v251
      %v384 = vpop.f32.mrf.mxu0
      %v385 = vadd.f32 %v320, %v384
      %386 = vmatmul.f32.gmra.mxu0 %v254
      %v387 = vpop.f32.mrf.mxu0
      %v388 = vadd.f32 %v323, %v387
      %389 = vmatmul.f32.gmra.mxu0 %v257
      %v390 = vpop.f32.mrf.mxu0
      %v391 = vadd.f32 %v326, %v390
      %392 = vmatmul.f32.gmra.mxu0 %v260
      %v393 = vpop.f32.mrf.mxu0
      %v394 = vadd.f32 %v329, %v393
      %395 = vmatmul.f32.gmra.mxu0 %v263
      %v396 = vpop.f32.mrf.mxu0
      %v397 = vadd.f32 %v332, %v396
      %398 = vmatmul.f32.gmra.mxu0 %v266
      %v399 = vpop.f32.mrf.mxu0
      %v400 = vadd.f32 %v335, %v399
      %401 = vmatmul.f32.gmra.mxu0 %v269
      %v402 = vpop.f32.mrf.mxu0
      %v403 = vadd.f32 %v338, %v402
      %404 = vmatmul.f32.gmra.mxu0 %v272
      %v405 = vpop.f32.mrf.mxu0
      %v406 = vadd.f32 %v341, %v405
      %407 = vdwg.mxu0
      %408 = vst [vmem:[%s173] sm:$0xff] %v361
      %409 = vst [vmem:[%s173 + $0x8] sm:$0xff] %v364
      %410 = vst [vmem:[%s173 + $0x10] sm:$0xff] %v367
      %411 = vst [vmem:[%s173 + $0x18] sm:$0xff] %v370
      %412 = vst [vmem:[%s173 + $0x20] sm:$0xff] %v373
      %413 = vst [vmem:[%s173 + $0x28] sm:$0xff] %v376
      %414 = vst [vmem:[%s173 + $0x30] sm:$0xff] %v379
      %415 = vst [vmem:[%s173 + $0x38] sm:$0xff] %v382
      %416 = vst [vmem:[%s173 + $0x40] sm:$0xff] %v385
      %417 = vst [vmem:[%s173 + $0x48] sm:$0xff] %v388
      %418 = vst [vmem:[%s173 + $0x50] sm:$0xff] %v391
      %419 = vst [vmem:[%s173 + $0x58] sm:$0xff] %v394
      %420 = vst [vmem:[%s173 + $0x60] sm:$0xff] %v397
      %421 = vst [vmem:[%s173 + $0x68] sm:$0xff] %v400
      %422 = vst [vmem:[%s173 + $0x70] sm:$0xff] %v403
      %423 = vst [vmem:[%s173 + $0x78] sm:$0xff] %v406
      %p424 = scmp.eq.s32.totalorder %s15, 0
      // Predicated region
      $region29: #{downstream_forward.4} parent=27 // pred_check
        %p425 = pneg %p424
      $region30: #{downstream_forward.4} parent=27 // pred_check_branch
        %427 = sbr.rel (%p425) target = $region32
      $region31: #{downstream_forward.4} parent=27 // pred_region
        %428 = vst [vmem:[%s3] sm:$0x3] 0.0
      $region32: #{downstream_forward.4} parent=27 // pred_fallthru
        _
      %v429 = vld [vmem:[%s3] sm:$0x1]
      %v430 = vadd.f32 %v361, %v364
      %v431 = vadd.f32 %v430, %v367
      %v432 = vadd.f32 %v431, %v370
      %v433 = vadd.f32 %v432, %v373
      %v434 = vadd.f32 %v433, %v376
      %v435 = vadd.f32 %v434, %v379
      %v436 = vadd.f32 %v435, %v382
      %v437 = vadd.f32 %v436, %v385
      %v438 = vadd.f32 %v437, %v388
      %v439 = vadd.f32 %v438, %v391
      %v440 = vadd.f32 %v439, %v394
      %v441 = vadd.f32 %v440, %v397
      %v442 = vadd.f32 %v441, %v400
      %v443 = vadd.f32 %v442, %v403
      %v444 = vadd.f32 %v443, %v406
      %v445 = vrot.slane %v444, 4
      %v446 = vadd.f32 %v444, %v445
      %v447 = vrot.slane %v446, 2
      %v448 = vadd.f32 %v446, %v447
      %v449 = vrot.slane %v448, 1
      %v450 = vadd.f32 %v448, %v449
      %v451 = vadd.f32 %v429, %v450
      %452 = vst [vmem:[%s3] sm:$0x1] %v451
      %v453 = vld [vmem:[%s3 + $0x1] sm:$0x1]
      %v454 = vmul.f32 %v361, %v361
      %v455 = vmul.f32 %v364, %v364
      %v456 = vmul.f32 %v367, %v367
      %v457 = vmul.f32 %v370, %v370
      %v458 = vmul.f32 %v373, %v373
      %v459 = vmul.f32 %v376, %v376
      %v460 = vmul.f32 %v379, %v379
      %v461 = vmul.f32 %v382, %v382
      %v462 = vmul.f32 %v385, %v385
      %v463 = vmul.f32 %v388, %v388
      %v464 = vmul.f32 %v391, %v391
      %v465 = vmul.f32 %v394, %v394
      %v466 = vmul.f32 %v397, %v397
      %v467 = vmul.f32 %v400, %v400
      %v468 = vmul.f32 %v403, %v403
      %v469 = vmul.f32 %v406, %v406
      %v470 = vadd.f32 %v454, %v455
      %v471 = vadd.f32 %v470, %v456
      %v472 = vadd.f32 %v471, %v457
      %v473 = vadd.f32 %v472, %v458
      %v474 = vadd.f32 %v473, %v459
      %v475 = vadd.f32 %v474, %v460
      %v476 = vadd.f32 %v475, %v461
      %v477 = vadd.f32 %v476, %v462
      %v478 = vadd.f32 %v477, %v463
      %v479 = vadd.f32 %v478, %v464
      %v480 = vadd.f32 %v479, %v465
      %v481 = vadd.f32 %v480, %v466
      %v482 = vadd.f32 %v481, %v467
      %v483 = vadd.f32 %v482, %v468
      %v484 = vadd.f32 %v483, %v469
      %v485 = vrot.slane %v484, 4
      %v486 = vadd.f32 %v484, %v485
      %v487 = vrot.slane %v486, 2
      %v488 = vadd.f32 %v486, %v487
      %v489 = vrot.slane %v488, 1
      %v490 = vadd.f32 %v488, %v489
      %v491 = vadd.f32 %v453, %v490
      %492 = vst [vmem:[%s3 + $0x1] sm:$0x1] %v491
      %s493 = smul.u32 16, %s15
      %p494 = scmp.lt.s32.totalorder %s493, 31
      %s495 = scalar_select %p494, %s493, 31
      %s496 = smul.addr %s495, 8
      %s497 = scalar_lea.vmem %s2, %s496
      // Predicated region
      $region33: #{downstream_forward.4} parent=27 // pred_check
        %p498 = pneg %p80
      $region34: #{downstream_forward.4} parent=27 // pred_check_branch
        %500 = sbr.rel (%p498) target = $region36
      $region35: #{downstream_forward.4} parent=27 // pred_region
        %s501 = smul.u32 16, %s15
      $region36: #{downstream_forward.4} parent=27 // pred_fallthru
        _
      // Predicated region
      $region37: #{downstream_forward.4} parent=27 // pred_check
        %p502 = pneg %p101
      $region38: #{downstream_forward.4} parent=27 // pred_check_branch
        %504 = sbr.rel (%p502) target = $region40
      $region39: #{downstream_forward.4} parent=27 // pred_region
        _
      $region40: #{downstream_forward.4} parent=27 // pred_fallthru
        _
      // Predicated region
      $region41: #{downstream_forward.4} parent=27 // pred_check
        %p505 = pneg %p101
      $region42: #{downstream_forward.4} parent=27 // pred_check_branch
        %507 = sbr.rel (%p505) target = $region44
      $region43: #{downstream_forward.4} parent=27 // pred_region
        _
      $region44: #{downstream_forward.4} parent=27 // pred_fallthru
        _
    $region28: #{downstream_forward.4} parent=5 // pred_fallthru
      _
    %p508 = scmp.le.s32.totalorder 2, %s10
    // Predicated region
    $region45: #{downstream_forward.4} parent=5 // pred_check
      %p509 = pneg %p508
    $region46: #{downstream_forward.4} parent=5 // pred_check_branch
      %511 = sbr.rel (%p509) target = $region48
    $region47: #{downstream_forward.4} parent=5 // pred_region
      %s512 = ssub.s32 %s10, 2
      // Predicated region
      $region49: #{downstream_forward.4} parent=47 // pred_check
        %p513 = pneg %p86
      $region50: #{downstream_forward.4} parent=47 // pred_check_branch
        %515 = sbr.rel (%p513) target = $region52
      $region51: #{downstream_forward.4} parent=47 // pred_region
        %s516 = smul.u32 16, %s16
        %p517 = scmp.lt.s32.totalorder %s516, 31
        %s518 = scalar_select %p517, %s516, 31
        %s519 = smul.addr %s518, 8
        %s520 = scalar_lea.vmem %s2, %s519
      $region52: #{downstream_forward.4} parent=47 // pred_fallthru
        _
    $region48: #{downstream_forward.4} parent=5 // pred_fallthru
      _
  $region6: #{downstream_forward.4} parent=0 // loop_footer
    %s14 = sadd.s32 1, %s10
  $region7: #{downstream_forward.4} parent=0 // loop_footer_branch
    %9 = sbr.rel target = $region3
  $region8: #{downstream_forward.4} parent=0 // loop_exit
    _

// kernel: downstream_forward.6
$region0: #{downstream_forward.6}
  #allocation0 [shape = 'u32[]', space=smem, size = 0x4, offset = 0x4, fixed_abs, tag = 'smem constant byte address 0x4 - core index']
  #allocation1 [shape = 'u32[72,128]{1,0:T(1,128)}', space=vmem, size = 0x9000, scoped, tag = 'internal scratch']
  %s0 = inlined_call_operand.vmem [shape: f32[256,64], index: 0, kind: input, shape index: {}]
  %s1 = inlined_call_operand.vmem [shape: f32[2,64], index: 1, kind: input, shape index: {}]
  %s2 = inlined_call_operand.vmem [shape: f32[64,16], index: 2, kind: input, shape index: {}]
  %s3 = inlined_call_operand.vmem [shape: f32[256,16], index: 3, kind: output, shape index: {0}]
  %s4 = inlined_call_operand.vmem [shape: f32[2,16], index: 4, kind: output, shape index: {1}]
  %5 = xla_tuple %s3, %s4
  %s6 = sld [smem:[#allocation0]]
  $region57: #{downstream_forward.6} parent=0
    _
  %s8 = ssub.s32 1, %s6
  %s9 = scalar_select 0, %s8, %s6
  loop: start=0, step=1, limit=4
  $region2: #{downstream_forward.6} parent=0 // loop_pre_header
    _
  $region3: #{downstream_forward.6} parent=0 // loop_header
    %s11 = sphi 0, %s15
    %p12 = scmp.ge.s32.totalorder %s11, 4
    %s21 = sphi 0, %s23
    %s24 = sphi 0, %s21
    %s25 = sphi 0, %s24
    %s41 = sphi 0, %s25
    %s45 = sphi 0, %s45
    %s47 = sphi 0, %s45
    %s48 = sphi 0, %s47
    %s62 = sphi 0, %s48
    %s66 = sphi 0, %s66
    %s68 = sphi 0, %s66
    %s69 = sphi 0, %s68
    %s83 = sphi 0, %s69
    %s89 = sphi 0, %s91
    %s92 = sphi 0, %s89
    %s93 = sphi 0, %s92
    %s109 = sphi 0, %s93
    %s113 = sphi 0, %s113
    %s115 = sphi 0, %s113
    %s116 = sphi 0, %s115
    %s130 = sphi 0, %s116
  $region4: #{downstream_forward.6} parent=0 // loop_header_branch
    %14 = sbr.rel (%p12) target = $region8
  $region5: #{downstream_forward.6} parent=0 // loop_body
    %s16 = ssub.s32 %s11, 1
    %s17 = ssub.s32 %s11, 2
    %s18 = sadd.s32 %s11, 1
    %s19 = ssub.s32 %s11, %s18
    %p20 = scmp.eq.s32.totalorder %s19, 0
    %s22 = sadd.s32 %s21, 1
    %s23 = scalar_select %p20, %s21, %s22
    %p26 = pneg %p20
    %p27 = scmp.eq.s32.totalorder %s11, 1
    %p28 = por %p26, %p27
    %p29 = scmp.ne.s32.totalorder %s21, %s24
    %p30 = scmp.eq.s32.totalorder %s11, 0
    %p31 = por %p29, %p30
    %p32 = scmp.ne.s32.totalorder %s21, %s24
    %p33 = scmp.eq.s32.totalorder %s16, 1
    %p34 = por %p32, %p33
    %p35 = scmp.ne.s32.totalorder %s24, %s25
    %p36 = scmp.eq.s32.totalorder %s16, 0
    %p37 = por %p35, %p36
    %p38 = scmp.ne.s32.totalorder %s24, %s25
    %p39 = scmp.eq.s32.totalorder %s17, 1
    %p40 = por %p38, %p39
    %p42 = scmp.ne.s32.totalorder %s25, %s41
    %p43 = scmp.eq.s32.totalorder %s17, 0
    %p44 = por %p42, %p43
    %s46 = sadd.s32 %s45, 1
    %p49 = scmp.eq.s32.totalorder %s11, 1
    %p50 = scmp.ne.s32.totalorder %s45, %s47
    %p51 = scmp.eq.s32.totalorder %s11, 0
    %p52 = por %p50, %p51
    %p53 = scmp.ne.s32.totalorder %s45, %s47
    %p54 = scmp.eq.s32.totalorder %s16, 1
    %p55 = por %p53, %p54
    %p56 = scmp.ne.s32.totalorder %s47, %s48
    %p57 = scmp.eq.s32.totalorder %s16, 0
    %p58 = por %p56, %p57
    %p59 = scmp.ne.s32.totalorder %s47, %s48
    %p60 = scmp.eq.s32.totalorder %s17, 1
    %p61 = por %p59, %p60
    %p63 = scmp.ne.s32.totalorder %s48, %s62
    %p64 = scmp.eq.s32.totalorder %s17, 0
    %p65 = por %p63, %p64
    %s67 = sadd.s32 %s66, 1
    %p70 = scmp.eq.s32.totalorder %s11, 1
    %p71 = scmp.ne.s32.totalorder %s66, %s68
    %p72 = scmp.eq.s32.totalorder %s11, 0
    %p73 = por %p71, %p72
    %p74 = scmp.ne.s32.totalorder %s66, %s68
    %p75 = scmp.eq.s32.totalorder %s16, 1
    %p76 = por %p74, %p75
    %p77 = scmp.ne.s32.totalorder %s68, %s69
    %p78 = scmp.eq.s32.totalorder %s16, 0
    %p79 = por %p77, %p78
    %p80 = scmp.ne.s32.totalorder %s68, %s69
    %p81 = scmp.eq.s32.totalorder %s17, 1
    %p82 = por %p80, %p81
    %p84 = scmp.ne.s32.totalorder %s69, %s83
    %p85 = scmp.eq.s32.totalorder %s17, 0
    %p86 = por %p84, %p85
    %s87 = ssub.s32 %s11, %s18
    %p88 = scmp.eq.s32.totalorder %s87, 0
    %s90 = sadd.s32 %s89, 1
    %s91 = scalar_select %p88, %s89, %s90
    %p94 = pneg %p88
    %p95 = scmp.eq.s32.totalorder %s11, 1
    %p96 = por %p94, %p95
    %p97 = scmp.ne.s32.totalorder %s89, %s92
    %p98 = scmp.eq.s32.totalorder %s11, 0
    %p99 = por %p97, %p98
    %p100 = scmp.ne.s32.totalorder %s89, %s92
    %p101 = scmp.eq.s32.totalorder %s16, 1
    %p102 = por %p100, %p101
    %p103 = scmp.ne.s32.totalorder %s92, %s93
    %p104 = scmp.eq.s32.totalorder %s16, 0
    %p105 = por %p103, %p104
    %p106 = scmp.ne.s32.totalorder %s92, %s93
    %p107 = scmp.eq.s32.totalorder %s17, 1
    %p108 = por %p106, %p107
    %p110 = scmp.ne.s32.totalorder %s93, %s109
    %p111 = scmp.eq.s32.totalorder %s17, 0
    %p112 = por %p110, %p111
    %s114 = sadd.s32 %s113, 1
    %p117 = scmp.eq.s32.totalorder %s11, 1
    %p118 = scmp.ne.s32.totalorder %s113, %s115
    %p119 = scmp.eq.s32.totalorder %s11, 0
    %p120 = por %p118, %p119
    %p121 = scmp.ne.s32.totalorder %s113, %s115
    %p122 = scmp.eq.s32.totalorder %s16, 1
    %p123 = por %p121, %p122
    %p124 = scmp.ne.s32.totalorder %s115, %s116
    %p125 = scmp.eq.s32.totalorder %s16, 0
    %p126 = por %p124, %p125
    %p127 = scmp.ne.s32.totalorder %s115, %s116
    %p128 = scmp.eq.s32.totalorder %s17, 1
    %p129 = por %p127, %p128
    %p131 = scmp.ne.s32.totalorder %s116, %s130
    %p132 = scmp.eq.s32.totalorder %s17, 0
    %p133 = por %p131, %p132
    %p134 = scmp.le.s32.totalorder 1, %s11
    %p135 = scmp.lt.s32.totalorder %s11, 3
    %p136 = pnand %p134, %p135
    %p137 = pneg %p136
    // Predicated region
    $region9: #{downstream_forward.6} parent=5 // pred_check
      _
    $region10: #{downstream_forward.6} parent=5 // pred_check_branch
      %139 = sbr.rel (%p136) target = $region12
    $region11: #{downstream_forward.6} parent=5 // pred_region
      %s140 = ssub.s32 %s11, 1
      // Predicated region
      $region13: #{downstream_forward.6} parent=11 // pred_check
        %p141 = pneg %p58
      $region14: #{downstream_forward.6} parent=11 // pred_check_branch
        %143 = sbr.rel (%p141) target = $region16
      $region15: #{downstream_forward.6} parent=11 // pred_region
        _
      $region16: #{downstream_forward.6} parent=11 // pred_fallthru
        _
      // Predicated region
      $region17: #{downstream_forward.6} parent=11 // pred_check
        %p144 = pneg %p79
      $region18: #{downstream_forward.6} parent=11 // pred_check_branch
        %146 = sbr.rel (%p144) target = $region20
      $region19: #{downstream_forward.6} parent=11 // pred_region
        _
      $region20: #{downstream_forward.6} parent=11 // pred_fallthru
        _
    $region12: #{downstream_forward.6} parent=5 // pred_fallthru
      _
    %p147 = scmp.lt.s32.totalorder %s11, 2
    // Predicated region
    $region21: #{downstream_forward.6} parent=5 // pred_check
      %p148 = pneg %p147
    $region22: #{downstream_forward.6} parent=5 // pred_check_branch
      %150 = sbr.rel (%p148) target = $region24
    $region23: #{downstream_forward.6} parent=5 // pred_region
      // Predicated region
      $region25: #{downstream_forward.6} parent=23 // pred_check
        %p151 = pneg %p31
      $region26: #{downstream_forward.6} parent=23 // pred_check_branch
        %153 = sbr.rel (%p151) target = $region28
      $region27: #{downstream_forward.6} parent=23 // pred_region
        %s154 = smul.u32 16, %s11
        %p155 = scmp.lt.s32.totalorder %s154, 31
        %s156 = scalar_select %p155, %s154, 31
        %s157 = smul.addr %s156, 8
        %s158 = scalar_lea.vmem %s0, %s157
        %s159 = smul.u32 16, %s11
      $region28: #{downstream_forward.6} parent=23 // pred_fallthru
        _
    $region24: #{downstream_forward.6} parent=5 // pred_fallthru
      _
    %p160 = scmp.le.s32.totalorder 1, %s11
    %p161 = scmp.lt.s32.totalorder %s11, 3
    %p162 = pnand %p160, %p161
    %p163 = pneg %p162
    // Predicated region
    $region29: #{downstream_forward.6} parent=5 // pred_check
      _
    $region30: #{downstream_forward.6} parent=5 // pred_check_branch
      %165 = sbr.rel (%p162) target = $region32
    $region31: #{downstream_forward.6} parent=5 // pred_region
      %s166 = ssub.s32 %s11, 1
      %s167 = smul.u32 16, %s16
      %p168 = scmp.lt.s32.totalorder %s167, 31
      %s169 = scalar_select %p168, %s167, 31
      %s170 = smul.addr %s169, 8
      %s171 = scalar_lea.vmem %s0, %s170
      %p172 = pneg %p37
      %p173 = pneg %p34
      %p174 = pneg %p58
      %p175 = pneg %p55
      %p176 = pneg %p79
      %p177 = pneg %p76
      %p178 = pneg %p105
      %p179 = pneg %p102
      %s180 = smul.u32 16, %s16
      %p181 = scmp.lt.s32.totalorder %s180, 31
      %s182 = scalar_select %p181, %s180, 31
      %s183 = smul.addr %s182, 8
      %s184 = scalar_lea.vmem %s3, %s183
      %p185 = pneg %p126
      %p186 = pneg %p123
      %s187 = smul.u32 16, %s16
      %p188 = scmp.lt.s32.totalorder %s187, 31
      %s189 = scalar_select %p188, %s187, 31
      %s190 = smul.addr %s189, 8
      %s191 = scalar_lea.vmem %s0, %s190
      %s192 = smul.u32 16, %s16
      %s193 = smul.u32 16, %s16
      %p194 = scmp.lt.s32.totalorder %s193, 31
      %s195 = scalar_select %p194, %s193, 31
      %s196 = smul.addr %s195, 8
      %s197 = scalar_lea.vmem %s3, %s196
      %s198 = smul.u32 16, %s16
      %v199 = vld [vmem:[%s191] sm:$0xff]
      %v200 = vld [vmem:[%s191 + $0x8] sm:$0xff]
      %v201 = vld [vmem:[%s191 + $0x10] sm:$0xff]
      %v202 = vld [vmem:[%s191 + $0x18] sm:$0xff]
      %v203 = vld [vmem:[%s191 + $0x20] sm:$0xff]
      %v204 = vld [vmem:[%s191 + $0x28] sm:$0xff]
      %v205 = vld [vmem:[%s191 + $0x30] sm:$0xff]
      %v206 = vld [vmem:[%s191 + $0x38] sm:$0xff]
      %v207 = vld [vmem:[%s191 + $0x40] sm:$0xff]
      %v208 = vld [vmem:[%s191 + $0x48] sm:$0xff]
      %v209 = vld [vmem:[%s191 + $0x50] sm:$0xff]
      %v210 = vld [vmem:[%s191 + $0x58] sm:$0xff]
      %v211 = vld [vmem:[%s191 + $0x60] sm:$0xff]
      %v212 = vld [vmem:[%s191 + $0x68] sm:$0xff]
      %v213 = vld [vmem:[%s191 + $0x70] sm:$0xff]
      %v214 = vld [vmem:[%s191 + $0x78] sm:$0xff]
      %v215 = vld [vmem:[%s1] sm:$0x1]
      %v216 = vperm.slane %v215, 0
      %v217 = vmul.f32 %v199, %v216
      %v218 = vmul.f32 %v200, %v216
      %v219 = vmul.f32 %v201, %v216
      %v220 = vmul.f32 %v202, %v216
      %v221 = vmul.f32 %v203, %v216
      %v222 = vmul.f32 %v204, %v216
      %v223 = vmul.f32 %v205, %v216
      %v224 = vmul.f32 %v206, %v216
      %v225 = vmul.f32 %v207, %v216
      %v226 = vmul.f32 %v208, %v216
      %v227 = vmul.f32 %v209, %v216
      %v228 = vmul.f32 %v210, %v216
      %v229 = vmul.f32 %v211, %v216
      %v230 = vmul.f32 %v212, %v216
      %v231 = vmul.f32 %v213, %v216
      %v232 = vmul.f32 %v214, %v216
      %v233 = vld [vmem:[%s1 + $0x1] sm:$0x1]
      %v234 = vperm.slane %v233, 0
      %v235 = vadd.f32 %v217, %v234
      %v236 = vadd.f32 %v218, %v234
      %v237 = vadd.f32 %v219, %v234
      %v238 = vadd.f32 %v220, %v234
      %v239 = vadd.f32 %v221, %v234
      %v240 = vadd.f32 %v222, %v234
      %v241 = vadd.f32 %v223, %v234
      %v242 = vadd.f32 %v224, %v234
      %v243 = vadd.f32 %v225, %v234
      %v244 = vadd.f32 %v226, %v234
      %v245 = vadd.f32 %v227, %v234
      %v246 = vadd.f32 %v228, %v234
      %v247 = vadd.f32 %v229, %v234
      %v248 = vadd.f32 %v230, %v234
      %v249 = vadd.f32 %v231, %v234
      %v250 = vadd.f32 %v232, %v234
      %vm251 = vcmp.gt.f32.partialorder %v235, 0.0
      %vm252 = vcmp.gt.f32.partialorder %v236, 0.0
      %vm253 = vcmp.gt.f32.partialorder %v237, 0.0
      %vm254 = vcmp.gt.f32.partialorder %v238, 0.0
      %vm255 = vcmp.gt.f32.partialorder %v239, 0.0
      %vm256 = vcmp.gt.f32.partialorder %v240, 0.0
      %vm257 = vcmp.gt.f32.partialorder %v241, 0.0
      %vm258 = vcmp.gt.f32.partialorder %v242, 0.0
      %vm259 = vcmp.gt.f32.partialorder %v243, 0.0
      %vm260 = vcmp.gt.f32.partialorder %v244, 0.0
      %vm261 = vcmp.gt.f32.partialorder %v245, 0.0
      %vm262 = vcmp.gt.f32.partialorder %v246, 0.0
      %vm263 = vcmp.gt.f32.partialorder %v247, 0.0
      %vm264 = vcmp.gt.f32.partialorder %v248, 0.0
      %vm265 = vcmp.gt.f32.partialorder %v249, 0.0
      %vm266 = vcmp.gt.f32.partialorder %v250, 0.0
      %v267 = vmul.f32 %v235, 0.01
      %v268 = vmul.f32 %v236, 0.01
      %v269 = vmul.f32 %v237, 0.01
      %v270 = vmul.f32 %v238, 0.01
      %v271 = vmul.f32 %v239, 0.01
      %v272 = vmul.f32 %v240, 0.01
      %v273 = vmul.f32 %v241, 0.01
      %v274 = vmul.f32 %v242, 0.01
      %v275 = vmul.f32 %v243, 0.01
      %v276 = vmul.f32 %v244, 0.01
      %v277 = vmul.f32 %v245, 0.01
      %v278 = vmul.f32 %v246, 0.01
      %v279 = vmul.f32 %v247, 0.01
      %v280 = vmul.f32 %v248, 0.01
      %v281 = vmul.f32 %v249, 0.01
      %v282 = vmul.f32 %v250, 0.01
      %v283 = vsel %vm251, %v235, %v267
      %v284 = vsel %vm252, %v236, %v268
      %v285 = vsel %vm253, %v237, %v269
      %v286 = vsel %vm254, %v238, %v270
      %v287 = vsel %vm255, %v239, %v271
      %v288 = vsel %vm256, %v240, %v272
      %v289 = vsel %vm257, %v241, %v273
      %v290 = vsel %vm258, %v242, %v274
      %v291 = vsel %vm259, %v243, %v275
      %v292 = vsel %vm260, %v244, %v276
      %v293 = vsel %vm261, %v245, %v277
      %v294 = vsel %vm262, %v246, %v278
      %v295 = vsel %vm263, %v247, %v279
      %v296 = vsel %vm264, %v248, %v280
      %v297 = vsel %vm265, %v249, %v281
      %v298 = vsel %vm266, %v250, %v282
      %s299 = smul.u32 %s16, 128
      %v300 = vlaneseq
      %v301 = vshrl.u32 %v300, 7
      %v302 = vadd.s32 %v301, 8
      %v303 = vadd.s32 %v301, 16
      %v304 = vadd.s32 %v301, 24
      %v305 = vadd.s32 %v301, 32
      %v306 = vadd.s32 %v301, 40
      %v307 = vadd.s32 %v301, 48
      %v308 = vadd.s32 %v301, 56
      %v309 = vadd.s32 %v301, 64
      %v310 = vadd.s32 %v301, 72
      %v311 = vadd.s32 %v301, 80
      %v312 = vadd.s32 %v301, 88
      %v313 = vadd.s32 %v301, 96
      %v314 = vadd.s32 %v301, 104
      %v315 = vadd.s32 %v301, 112
      %v316 = vadd.s32 %v301, 120
      %v317 = vstv %s299
      %v318 = vadd.s32 %v317, %v301
      %v319 = vadd.s32 %v317, %v302
      %v320 = vadd.s32 %v317, %v303
      %v321 = vadd.s32 %v317, %v304
      %v322 = vadd.s32 %v317, %v305
      %v323 = vadd.s32 %v317, %v306
      %v324 = vadd.s32 %v317, %v307
      %v325 = vadd.s32 %v317, %v308
      %v326 = vadd.s32 %v317, %v309
      %v327 = vadd.s32 %v317, %v310
      %v328 = vadd.s32 %v317, %v311
      %v329 = vadd.s32 %v317, %v312
      %v330 = vadd.s32 %v317, %v313
      %v331 = vadd.s32 %v317, %v314
      %v332 = vadd.s32 %v317, %v315
      %v333 = vadd.s32 %v317, %v316
      %vm334 = vcmp.lt.s32.totalorder %v318, 200
      %vm335 = vcmp.lt.s32.totalorder %v319, 200
      %vm336 = vcmp.lt.s32.totalorder %v320, 200
      %vm337 = vcmp.lt.s32.totalorder %v321, 200
      %vm338 = vcmp.lt.s32.totalorder %v322, 200
      %vm339 = vcmp.lt.s32.totalorder %v323, 200
      %vm340 = vcmp.lt.s32.totalorder %v324, 200
      %vm341 = vcmp.lt.s32.totalorder %v325, 200
      %vm342 = vcmp.lt.s32.totalorder %v326, 200
      %vm343 = vcmp.lt.s32.totalorder %v327, 200
      %vm344 = vcmp.lt.s32.totalorder %v328, 200
      %vm345 = vcmp.lt.s32.totalorder %v329, 200
      %vm346 = vcmp.lt.s32.totalorder %v330, 200
      %vm347 = vcmp.lt.s32.totalorder %v331, 200
      %vm348 = vcmp.lt.s32.totalorder %v332, 200
      %vm349 = vcmp.lt.s32.totalorder %v333, 200
      %v350 = vsel %vm334, 1, 0
      %v351 = vsel %vm335, 1, 0
      %v352 = vsel %vm336, 1, 0
      %v353 = vsel %vm337, 1, 0
      %v354 = vsel %vm338, 1, 0
      %v355 = vsel %vm339, 1, 0
      %v356 = vsel %vm340, 1, 0
      %v357 = vsel %vm341, 1, 0
      %v358 = vsel %vm342, 1, 0
      %v359 = vsel %vm343, 1, 0
      %v360 = vsel %vm344, 1, 0
      %v361 = vsel %vm345, 1, 0
      %v362 = vsel %vm346, 1, 0
      %v363 = vsel %vm347, 1, 0
      %v364 = vsel %vm348, 1, 0
      %v365 = vsel %vm349, 1, 0
      %vm366 = vcmp.eq.s32.totalorder %v350, 1
      %vm367 = vcmp.eq.s32.totalorder %v351, 1
      %vm368 = vcmp.eq.s32.totalorder %v352, 1
      %vm369 = vcmp.eq.s32.totalorder %v353, 1
      %vm370 = vcmp.eq.s32.totalorder %v354, 1
      %vm371 = vcmp.eq.s32.totalorder %v355, 1
      %vm372 = vcmp.eq.s32.totalorder %v356, 1
      %vm373 = vcmp.eq.s32.totalorder %v357, 1
      %vm374 = vcmp.eq.s32.totalorder %v358, 1
      %vm375 = vcmp.eq.s32.totalorder %v359, 1
      %vm376 = vcmp.eq.s32.totalorder %v360, 1
      %vm377 = vcmp.eq.s32.totalorder %v361, 1
      %vm378 = vcmp.eq.s32.totalorder %v362, 1
      %vm379 = vcmp.eq.s32.totalorder %v363, 1
      %vm380 = vcmp.eq.s32.totalorder %v364, 1
      %vm381 = vcmp.eq.s32.totalorder %v365, 1
      %v382 = vsel %vm366, %v283, 0.0
      %v383 = vsel %vm367, %v284, 0.0
      %v384 = vsel %vm368, %v285, 0.0
      %v385 = vsel %vm369, %v286, 0.0
      %v386 = vsel %vm370, %v287, 0.0
      %v387 = vsel %vm371, %v288, 0.0
      %v388 = vsel %vm372, %v289, 0.0
      %v389 = vsel %vm373, %v290, 0.0
      %v390 = vsel %vm374, %v291, 0.0
      %v391 = vsel %vm375, %v292, 0.0
      %v392 = vsel %vm376, %v293, 0.0
      %v393 = vsel %vm377, %v294, 0.0
      %v394 = vsel %vm378, %v295, 0.0
      %v395 = vsel %vm379, %v296, 0.0
      %v396 = vsel %vm380, %v297, 0.0
      %v397 = vsel %vm381, %v298, 0.0
      %v398 = vld [vmem:[%s2] sm:$0xff]
      %v399 = vld [vmem:[%s2 + $0x8] sm:$0xff]
      %v400 = vld [vmem:[%s2 + $0x10] sm:$0xff]
      %v401 = vld [vmem:[%s2 + $0x18] sm:$0xff]
      %v402 = vld [vmem:[%s2 + $0x20] sm:$0xff]
      %v403 = vld [vmem:[%s2 + $0x28] sm:$0xff]
      %v404 = vld [vmem:[%s2 + $0x30] sm:$0xff]
      %v405 = vld [vmem:[%s2 + $0x38] sm:$0xff]
      %vm406 = vcmask 523264
      %v408 = vsel %vm406, %v382, 0
      %v411 = vsel %vm406, %v383, 0
      %v414 = vsel %vm406, %v384, 0
      %v417 = vsel %vm406, %v385, 0
      %v420 = vsel %vm406, %v386, 0
      %v423 = vsel %vm406, %v387, 0
      %v426 = vsel %vm406, %v388, 0
      %v429 = vsel %vm406, %v389, 0
      %v432 = vsel %vm406, %v390, 0
      %v435 = vsel %vm406, %v391, 0
      %v438 = vsel %vm406, %v392, 0
      %v441 = vsel %vm406, %v393, 0
      %v444 = vsel %vm406, %v394, 0
      %v447 = vsel %vm406, %v395, 0
      %v450 = vsel %vm406, %v396, 0
      %v453 = vsel %vm406, %v397, 0
      %455 = vmatpush.msra.mxu0 0.0
      %456 = vmatpush.msra.mxu0 0.0
      %457 = vmatpush.msra.mxu0 0.0
      %458 = vmatpush.msra.mxu0 0.0
      %459 = vmatpush.msra.mxu0 0.0
      %460 = vmatpush.msra.mxu0 0.0
      %461 = vmatpush.msra.mxu0 0.0
      %462 = vmatpush.msra.mxu0 0.0
      %463 = vmatpush.msra.mxu0 %v405
      %464 = vmatpush.msra.mxu0 %v404
      %465 = vmatpush.msra.mxu0 %v403
      %466 = vmatpush.msra.mxu0 %v402
      %467 = vmatpush.msra.mxu0 %v401
      %468 = vmatpush.msra.mxu0 %v400
      %469 = vmatpush.msra.mxu0 %v399
      %470 = vmatpush.msra.mxu0 %v398
      %471 = vmatmul.f32.gmra.mxu0 %v408
      %v472 = vpop.f32.mrf.mxu0
      %v473 = vadd.f32 0.0, %v472
      %474 = vmatmul.f32.gmra.mxu0 %v411
      %v475 = vpop.f32.mrf.mxu0
      %v476 = vadd.f32 0.0, %v475
      %477 = vmatmul.f32.gmra.mxu0 %v414
      %v478 = vpop.f32.mrf.mxu0
      %v479 = vadd.f32 0.0, %v478
      %480 = vmatmul.f32.gmra.mxu0 %v417
      %v481 = vpop.f32.mrf.mxu0
      %v482 = vadd.f32 0.0, %v481
      %483 = vmatmul.f32.gmra.mxu0 %v420
      %v484 = vpop.f32.mrf.mxu0
      %v485 = vadd.f32 0.0, %v484
      %486 = vmatmul.f32.gmra.mxu0 %v423
      %v487 = vpop.f32.mrf.mxu0
      %v488 = vadd.f32 0.0, %v487
      %489 = vmatmul.f32.gmra.mxu0 %v426
      %v490 = vpop.f32.mrf.mxu0
      %v491 = vadd.f32 0.0, %v490
      %492 = vmatmul.f32.gmra.mxu0 %v429
      %v493 = vpop.f32.mrf.mxu0
      %v494 = vadd.f32 0.0, %v493
      %495 = vmatmul.f32.gmra.mxu0 %v432
      %v496 = vpop.f32.mrf.mxu0
      %v497 = vadd.f32 0.0, %v496
      %498 = vmatmul.f32.gmra.mxu0 %v435
      %v499 = vpop.f32.mrf.mxu0
      %v500 = vadd.f32 0.0, %v499
      %501 = vmatmul.f32.gmra.mxu0 %v438
      %v502 = vpop.f32.mrf.mxu0
      %v503 = vadd.f32 0.0, %v502
      %504 = vmatmul.f32.gmra.mxu0 %v441
      %v505 = vpop.f32.mrf.mxu0
      %v506 = vadd.f32 0.0, %v505
      %507 = vmatmul.f32.gmra.mxu0 %v444
      %v508 = vpop.f32.mrf.mxu0
      %v509 = vadd.f32 0.0, %v508
      %510 = vmatmul.f32.gmra.mxu0 %v447
      %v511 = vpop.f32.mrf.mxu0
      %v512 = vadd.f32 0.0, %v511
      %513 = vmatmul.f32.gmra.mxu0 %v450
      %v514 = vpop.f32.mrf.mxu0
      %v515 = vadd.f32 0.0, %v514
      %516 = vmatmul.f32.gmra.mxu0 %v453
      %v517 = vpop.f32.mrf.mxu0
      %v518 = vadd.f32 0.0, %v517
      %519 = vdwg.mxu0
      %vm520 = vcmask 130048
      %521 = vst.msk [vmem:[%s197] sm:$0xff] %vm520, %v473
      %522 = vst.msk [vmem:[%s197 + $0x8] sm:$0xff] %vm520, %v476
      %523 = vst.msk [vmem:[%s197 + $0x10] sm:$0xff] %vm520, %v479
      %524 = vst.msk [vmem:[%s197 + $0x18] sm:$0xff] %vm520, %v482
      %525 = vst.msk [vmem:[%s197 + $0x20] sm:$0xff] %vm520, %v485
      %526 = vst.msk [vmem:[%s197 + $0x28] sm:$0xff] %vm520, %v488
      %527 = vst.msk [vmem:[%s197 + $0x30] sm:$0xff] %vm520, %v491
      %528 = vst.msk [vmem:[%s197 + $0x38] sm:$0xff] %vm520, %v494
      %529 = vst.msk [vmem:[%s197 + $0x40] sm:$0xff] %vm520, %v497
      %530 = vst.msk [vmem:[%s197 + $0x48] sm:$0xff] %vm520, %v500
      %531 = vst.msk [vmem:[%s197 + $0x50] sm:$0xff] %vm520, %v503
      %532 = vst.msk [vmem:[%s197 + $0x58] sm:$0xff] %vm520, %v506
      %533 = vst.msk [vmem:[%s197 + $0x60] sm:$0xff] %vm520, %v509
      %534 = vst.msk [vmem:[%s197 + $0x68] sm:$0xff] %vm520, %v512
      %535 = vst.msk [vmem:[%s197 + $0x70] sm:$0xff] %vm520, %v515
      %536 = vst.msk [vmem:[%s197 + $0x78] sm:$0xff] %vm520, %v518
      %p537 = scmp.eq.s32.totalorder %s16, 0
      // Predicated region
      $region33: #{downstream_forward.6} parent=31 // pred_check
        %p538 = pneg %p537
      $region34: #{downstream_forward.6} parent=31 // pred_check_branch
        %540 = sbr.rel (%p538) target = $region36
      $region35: #{downstream_forward.6} parent=31 // pred_region
        %vm541 = vcmask 123904
        %542 = vst.msk [vmem:[%s4] sm:$0x3] %vm541, 0.0
      $region36: #{downstream_forward.6} parent=31 // pred_fallthru
        _
      %v543 = vld [vmem:[%s4] sm:$0x1]
      %v544 = vsel %vm520, %v473, 0.0
      %v545 = vsel %vm520, %v476, 0.0
      %v546 = vadd.f32 %v544, %v545
      %v547 = vsel %vm520, %v479, 0.0
      %v548 = vadd.f32 %v546, %v547
      %v549 = vsel %vm520, %v482, 0.0
      %v550 = vadd.f32 %v548, %v549
      %v551 = vsel %vm520, %v485, 0.0
      %v552 = vadd.f32 %v550, %v551
      %v553 = vsel %vm520, %v488, 0.0
      %v554 = vadd.f32 %v552, %v553
      %v555 = vsel %vm520, %v491, 0.0
      %v556 = vadd.f32 %v554, %v555
      %v557 = vsel %vm520, %v494, 0.0
      %v558 = vadd.f32 %v556, %v557
      %v559 = vsel %vm520, %v497, 0.0
      %v560 = vadd.f32 %v558, %v559
      %v561 = vsel %vm520, %v500, 0.0
      %v562 = vadd.f32 %v560, %v561
      %v563 = vsel %vm520, %v503, 0.0
      %v564 = vadd.f32 %v562, %v563
      %v565 = vsel %vm520, %v506, 0.0
      %v566 = vadd.f32 %v564, %v565
      %v567 = vsel %vm520, %v509, 0.0
      %v568 = vadd.f32 %v566, %v567
      %v569 = vsel %vm520, %v512, 0.0
      %v570 = vadd.f32 %v568, %v569
      %v571 = vsel %vm520, %v515, 0.0
      %v572 = vadd.f32 %v570, %v571
      %v573 = vsel %vm520, %v518, 0.0
      %v574 = vadd.f32 %v572, %v573
      %v575 = vrot.slane %v574, 4
      %v576 = vadd.f32 %v574, %v575
      %v577 = vrot.slane %v576, 2
      %v578 = vadd.f32 %v576, %v577
      %v579 = vrot.slane %v578, 1
      %v580 = vadd.f32 %v578, %v579
      %v581 = vadd.f32 %v543, %v580
      %vm582 = vcmask 122880
      %583 = vst.msk [vmem:[%s4] sm:$0x1] %vm582, %v581
      %v584 = vld [vmem:[%s4 + $0x1] sm:$0x1]
      %v585 = vmul.f32 %v473, %v473
      %v586 = vmul.f32 %v476, %v476
      %v587 = vmul.f32 %v479, %v479
      %v588 = vmul.f32 %v482, %v482
      %v589 = vmul.f32 %v485, %v485
      %v590 = vmul.f32 %v488, %v488
      %v591 = vmul.f32 %v491, %v491
      %v592 = vmul.f32 %v494, %v494
      %v593 = vmul.f32 %v497, %v497
      %v594 = vmul.f32 %v500, %v500
      %v595 = vmul.f32 %v503, %v503
      %v596 = vmul.f32 %v506, %v506
      %v597 = vmul.f32 %v509, %v509
      %v598 = vmul.f32 %v512, %v512
      %v599 = vmul.f32 %v515, %v515
      %v600 = vmul.f32 %v518, %v518
      %v601 = vsel %vm520, %v585, 0.0
      %v602 = vsel %vm520, %v586, 0.0
      %v603 = vadd.f32 %v601, %v602
      %v604 = vsel %vm520, %v587, 0.0
      %v605 = vadd.f32 %v603, %v604
      %v606 = vsel %vm520, %v588, 0.0
      %v607 = vadd.f32 %v605, %v606
      %v608 = vsel %vm520, %v589, 0.0
      %v609 = vadd.f32 %v607, %v608
      %v610 = vsel %vm520, %v590, 0.0
      %v611 = vadd.f32 %v609, %v610
      %v612 = vsel %vm520, %v591, 0.0
      %v613 = vadd.f32 %v611, %v612
      %v614 = vsel %vm520, %v592, 0.0
      %v615 = vadd.f32 %v613, %v614
      %v616 = vsel %vm520, %v593, 0.0
      %v617 = vadd.f32 %v615, %v616
      %v618 = vsel %vm520, %v594, 0.0
      %v619 = vadd.f32 %v617, %v618
      %v620 = vsel %vm520, %v595, 0.0
      %v621 = vadd.f32 %v619, %v620
      %v622 = vsel %vm520, %v596, 0.0
      %v623 = vadd.f32 %v621, %v622
      %v624 = vsel %vm520, %v597, 0.0
      %v625 = vadd.f32 %v623, %v624
      %v626 = vsel %vm520, %v598, 0.0
      %v627 = vadd.f32 %v625, %v626
      %v628 = vsel %vm520, %v599, 0.0
      %v629 = vadd.f32 %v627, %v628
      %v630 = vsel %vm520, %v600, 0.0
      %v631 = vadd.f32 %v629, %v630
      %v632 = vrot.slane %v631, 4
      %v633 = vadd.f32 %v631, %v632
      %v634 = vrot.slane %v633, 2
      %v635 = vadd.f32 %v633, %v634
      %v636 = vrot.slane %v635, 1
      %v637 = vadd.f32 %v635, %v636
      %v638 = vadd.f32 %v584, %v637
      %639 = vst.msk [vmem:[%s4 + $0x1] sm:$0x1] %vm582, %v638
      %s640 = smul.u32 16, %s16
      %p641 = scmp.lt.s32.totalorder %s640, 31
      %s642 = scalar_select %p641, %s640, 31
      %s643 = smul.addr %s642, 8
      %s644 = scalar_lea.vmem %s3, %s643
      // Predicated region
      $region37: #{downstream_forward.6} parent=31 // pred_check
        %p645 = pneg %p102
      $region38: #{downstream_forward.6} parent=31 // pred_check_branch
        %647 = sbr.rel (%p645) target = $region40
      $region39: #{downstream_forward.6} parent=31 // pred_region
        %s648 = smul.u32 16, %s16
      $region40: #{downstream_forward.6} parent=31 // pred_fallthru
        _
      // Predicated region
      $region41: #{downstream_forward.6} parent=31 // pred_check
        %p649 = pneg %p123
      $region42: #{downstream_forward.6} parent=31 // pred_check_branch
        %651 = sbr.rel (%p649) target = $region44
      $region43: #{downstream_forward.6} parent=31 // pred_region
        _
      $region44: #{downstream_forward.6} parent=31 // pred_fallthru
        _
      // Predicated region
      $region45: #{downstream_forward.6} parent=31 // pred_check
        %p652 = pneg %p123
      $region46: #{downstream_forward.6} parent=31 // pred_check_branch
        %654 = sbr.rel (%p652) target = $region48
      $region47: #{downstream_forward.6} parent=31 // pred_region
        _
      $region48: #{downstream_forward.6} parent=31 // pred_fallthru
        _
    $region32: #{downstream_forward.6} parent=5 // pred_fallthru
      _
    %p655 = scmp.le.s32.totalorder 2, %s11
    // Predicated region
    $region49: #{downstream_forward.6} parent=5 // pred_check
      %p656 = pneg %p655
    $region50: #{downstream_forward.6} parent=5 // pred_check_branch
      %658 = sbr.rel (%p656) target = $region52
    $region51: #{downstream_forward.6} parent=5 // pred_region
      %s659 = ssub.s32 %s11, 2
      // Predicated region
      $region53: #{downstream_forward.6} parent=51 // pred_check
        %p660 = pneg %p108
      $region54: #{downstream_forward.6} parent=51 // pred_check_branch
        %662 = sbr.rel (%p660) target = $region56
      $region55: #{downstream_forward.6} parent=51 // pred_region
        %s663 = smul.u32 16, %s17
        %p664 = scmp.lt.s32.totalorder %s663, 31
        %s665 = scalar_select %p664, %s663, 31
        %s666 = smul.addr %s665, 8
        %s667 = scalar_lea.vmem %s3, %s666
      $region56: #{downstream_forward.6} parent=51 // pred_fallthru
        _
    $region52: #{downstream_forward.6} parent=5 // pred_fallthru
      _
  $region6: #{downstream_forward.6} parent=0 // loop_footer
    %s15 = sadd.s32 1, %s11
  $region7: #{downstream_forward.6} parent=0 // loop_footer_branch
    %10 = sbr.rel target = $region3
  $region8: #{downstream_forward.6} parent=0 // loop_exit
    _

// kernel: downstream_forward.7
$region0: #{downstream_forward.7}
  #allocation0 [shape = 'u32[]', space=smem, size = 0x4, offset = 0x4, fixed_abs, tag = 'smem constant byte address 0x4 - core index']
  #allocation1 [shape = 'u32[72,128]{1,0:T(1,128)}', space=vmem, size = 0x9000, scoped, tag = 'internal scratch']
  #allocation2 [shape = 'f32[1,1]{1,0:T(1,128)S(1)}', space=vmem, size = 0x200, scoped, tag = 'scoped memory for downstream_forward.7']
  %s0 = inlined_call_operand.vmem [shape: f32[256,16], index: 0, kind: input, shape index: {}]
  %s1 = inlined_call_operand.vmem [shape: f32[2,16], index: 1, kind: input, shape index: {}]
  %s2 = inlined_call_operand.vmem [shape: f32[1,16], index: 2, kind: input, shape index: {}]
  %s3 = inlined_call_operand.<no memory space> [shape: f32[1,1], index: 3, kind: input, shape index: {}]
  %s4 = inlined_call_operand.vmem [shape: f32[256,1], index: 4, kind: output, shape index: {}]
  %s5 = sld [smem:[#allocation0]]
  $region49: #{downstream_forward.7} parent=0
    _
  %s7 = ssub.s32 1, %s5
  %s8 = scalar_select 0, %s7, %s5
  %v9 = vstv %s3
  %10 = vst [vmem:[#allocation2] sm:$0x1] %v9
  loop: start=0, step=1, limit=4
  $region2: #{downstream_forward.7} parent=0 // loop_pre_header
    _
  $region3: #{downstream_forward.7} parent=0 // loop_header
    %s12 = sphi 0, %s16
    %p13 = scmp.ge.s32.totalorder %s12, 4
    %s22 = sphi 0, %s24
    %s25 = sphi 0, %s22
    %s26 = sphi 0, %s25
    %s42 = sphi 0, %s26
    %s46 = sphi 0, %s46
    %s48 = sphi 0, %s46
    %s49 = sphi 0, %s48
    %s63 = sphi 0, %s49
    %s67 = sphi 0, %s67
    %s69 = sphi 0, %s67
    %s70 = sphi 0, %s69
    %s84 = sphi 0, %s70
    %s88 = sphi 0, %s88
    %s90 = sphi 0, %s88
    %s91 = sphi 0, %s90
    %s105 = sphi 0, %s91
    %s111 = sphi 0, %s113
    %s114 = sphi 0, %s111
    %s115 = sphi 0, %s114
    %s131 = sphi 0, %s115
  $region4: #{downstream_forward.7} parent=0 // loop_header_branch
    %15 = sbr.rel (%p13) target = $region8
  $region5: #{downstream_forward.7} parent=0 // loop_body
    %s17 = ssub.s32 %s12, 1
    %s18 = ssub.s32 %s12, 2
    %s19 = sadd.s32 %s12, 1
    %s20 = ssub.s32 %s12, %s19
    %p21 = scmp.eq.s32.totalorder %s20, 0
    %s23 = sadd.s32 %s22, 1
    %s24 = scalar_select %p21, %s22, %s23
    %p27 = pneg %p21
    %p28 = scmp.eq.s32.totalorder %s12, 1
    %p29 = por %p27, %p28
    %p30 = scmp.ne.s32.totalorder %s22, %s25
    %p31 = scmp.eq.s32.totalorder %s12, 0
    %p32 = por %p30, %p31
    %p33 = scmp.ne.s32.totalorder %s22, %s25
    %p34 = scmp.eq.s32.totalorder %s17, 1
    %p35 = por %p33, %p34
    %p36 = scmp.ne.s32.totalorder %s25, %s26
    %p37 = scmp.eq.s32.totalorder %s17, 0
    %p38 = por %p36, %p37
    %p39 = scmp.ne.s32.totalorder %s25, %s26
    %p40 = scmp.eq.s32.totalorder %s18, 1
    %p41 = por %p39, %p40
    %p43 = scmp.ne.s32.totalorder %s26, %s42
    %p44 = scmp.eq.s32.totalorder %s18, 0
    %p45 = por %p43, %p44
    %s47 = sadd.s32 %s46, 1
    %p50 = scmp.eq.s32.totalorder %s12, 1
    %p51 = scmp.ne.s32.totalorder %s46, %s48
    %p52 = scmp.eq.s32.totalorder %s12, 0
    %p53 = por %p51, %p52
    %p54 = scmp.ne.s32.totalorder %s46, %s48
    %p55 = scmp.eq.s32.totalorder %s17, 1
    %p56 = por %p54, %p55
    %p57 = scmp.ne.s32.totalorder %s48, %s49
    %p58 = scmp.eq.s32.totalorder %s17, 0
    %p59 = por %p57, %p58
    %p60 = scmp.ne.s32.totalorder %s48, %s49
    %p61 = scmp.eq.s32.totalorder %s18, 1
    %p62 = por %p60, %p61
    %p64 = scmp.ne.s32.totalorder %s49, %s63
    %p65 = scmp.eq.s32.totalorder %s18, 0
    %p66 = por %p64, %p65
    %s68 = sadd.s32 %s67, 1
    %p71 = scmp.eq.s32.totalorder %s12, 1
    %p72 = scmp.ne.s32.totalorder %s67, %s69
    %p73 = scmp.eq.s32.totalorder %s12, 0
    %p74 = por %p72, %p73
    %p75 = scmp.ne.s32.totalorder %s67, %s69
    %p76 = scmp.eq.s32.totalorder %s17, 1
    %p77 = por %p75, %p76
    %p78 = scmp.ne.s32.totalorder %s69, %s70
    %p79 = scmp.eq.s32.totalorder %s17, 0
    %p80 = por %p78, %p79
    %p81 = scmp.ne.s32.totalorder %s69, %s70
    %p82 = scmp.eq.s32.totalorder %s18, 1
    %p83 = por %p81, %p82
    %p85 = scmp.ne.s32.totalorder %s70, %s84
    %p86 = scmp.eq.s32.totalorder %s18, 0
    %p87 = por %p85, %p86
    %s89 = sadd.s32 %s88, 1
    %p92 = scmp.eq.s32.totalorder %s12, 1
    %p93 = scmp.ne.s32.totalorder %s88, %s90
    %p94 = scmp.eq.s32.totalorder %s12, 0
    %p95 = por %p93, %p94
    %p96 = scmp.ne.s32.totalorder %s88, %s90
    %p97 = scmp.eq.s32.totalorder %s17, 1
    %p98 = por %p96, %p97
    %p99 = scmp.ne.s32.totalorder %s90, %s91
    %p100 = scmp.eq.s32.totalorder %s17, 0
    %p101 = por %p99, %p100
    %p102 = scmp.ne.s32.totalorder %s90, %s91
    %p103 = scmp.eq.s32.totalorder %s18, 1
    %p104 = por %p102, %p103
    %p106 = scmp.ne.s32.totalorder %s91, %s105
    %p107 = scmp.eq.s32.totalorder %s18, 0
    %p108 = por %p106, %p107
    %s109 = ssub.s32 %s12, %s19
    %p110 = scmp.eq.s32.totalorder %s109, 0
    %s112 = sadd.s32 %s111, 1
    %s113 = scalar_select %p110, %s111, %s112
    %p116 = pneg %p110
    %p117 = scmp.eq.s32.totalorder %s12, 1
    %p118 = por %p116, %p117
    %p119 = scmp.ne.s32.totalorder %s111, %s114
    %p120 = scmp.eq.s32.totalorder %s12, 0
    %p121 = por %p119, %p120
    %p122 = scmp.ne.s32.totalorder %s111, %s114
    %p123 = scmp.eq.s32.totalorder %s17, 1
    %p124 = por %p122, %p123
    %p125 = scmp.ne.s32.totalorder %s114, %s115
    %p126 = scmp.eq.s32.totalorder %s17, 0
    %p127 = por %p125, %p126
    %p128 = scmp.ne.s32.totalorder %s114, %s115
    %p129 = scmp.eq.s32.totalorder %s18, 1
    %p130 = por %p128, %p129
    %p132 = scmp.ne.s32.totalorder %s115, %s131
    %p133 = scmp.eq.s32.totalorder %s18, 0
    %p134 = por %p132, %p133
    %p135 = scmp.le.s32.totalorder 1, %s12
    %p136 = scmp.lt.s32.totalorder %s12, 3
    %p137 = pnand %p135, %p136
    %p138 = pneg %p137
    // Predicated region
    $region9: #{downstream_forward.7} parent=5 // pred_check
      _
    $region10: #{downstream_forward.7} parent=5 // pred_check_branch
      %140 = sbr.rel (%p137) target = $region12
    $region11: #{downstream_forward.7} parent=5 // pred_region
      %s141 = ssub.s32 %s12, 1
      // Predicated region
      $region13: #{downstream_forward.7} parent=11 // pred_check
        %p142 = pneg %p59
      $region14: #{downstream_forward.7} parent=11 // pred_check_branch
        %144 = sbr.rel (%p142) target = $region16
      $region15: #{downstream_forward.7} parent=11 // pred_region
        _
      $region16: #{downstream_forward.7} parent=11 // pred_fallthru
        _
      // Predicated region
      $region17: #{downstream_forward.7} parent=11 // pred_check
        %p145 = pneg %p80
      $region18: #{downstream_forward.7} parent=11 // pred_check_branch
        %147 = sbr.rel (%p145) target = $region20
      $region19: #{downstream_forward.7} parent=11 // pred_region
        _
      $region20: #{downstream_forward.7} parent=11 // pred_fallthru
        _
      // Predicated region
      $region21: #{downstream_forward.7} parent=11 // pred_check
        %p148 = pneg %p101
      $region22: #{downstream_forward.7} parent=11 // pred_check_branch
        %150 = sbr.rel (%p148) target = $region24
      $region23: #{downstream_forward.7} parent=11 // pred_region
        _
      $region24: #{downstream_forward.7} parent=11 // pred_fallthru
        _
    $region12: #{downstream_forward.7} parent=5 // pred_fallthru
      _
    %p151 = scmp.lt.s32.totalorder %s12, 2
    // Predicated region
    $region25: #{downstream_forward.7} parent=5 // pred_check
      %p152 = pneg %p151
    $region26: #{downstream_forward.7} parent=5 // pred_check_branch
      %154 = sbr.rel (%p152) target = $region28
    $region27: #{downstream_forward.7} parent=5 // pred_region
      // Predicated region
      $region29: #{downstream_forward.7} parent=27 // pred_check
        %p155 = pneg %p32
      $region30: #{downstream_forward.7} parent=27 // pred_check_branch
        %157 = sbr.rel (%p155) target = $region32
      $region31: #{downstream_forward.7} parent=27 // pred_region
        %s158 = smul.u32 16, %s12
        %p159 = scmp.lt.s32.totalorder %s158, 31
        %s160 = scalar_select %p159, %s158, 31
        %s161 = smul.addr %s160, 8
        %s162 = scalar_lea.vmem %s0, %s161
        %s163 = smul.u32 16, %s12
      $region32: #{downstream_forward.7} parent=27 // pred_fallthru
        _
    $region28: #{downstream_forward.7} parent=5 // pred_fallthru
      _
    %p164 = scmp.le.s32.totalorder 1, %s12
    %p165 = scmp.lt.s32.totalorder %s12, 3
    %p166 = pnand %p164, %p165
    %p167 = pneg %p166
    // Predicated region
    $region33: #{downstream_forward.7} parent=5 // pred_check
      _
    $region34: #{downstream_forward.7} parent=5 // pred_check_branch
      %169 = sbr.rel (%p166) target = $region36
    $region35: #{downstream_forward.7} parent=5 // pred_region
      %s170 = ssub.s32 %s12, 1
      %s171 = smul.u32 16, %s17
      %p172 = scmp.lt.s32.totalorder %s171, 31
      %s173 = scalar_select %p172, %s171, 31
      %s174 = smul.addr %s173, 8
      %s175 = scalar_lea.vmem %s0, %s174
      %p176 = pneg %p38
      %p177 = pneg %p35
      %p178 = pneg %p59
      %p179 = pneg %p56
      %p180 = pneg %p80
      %p181 = pneg %p77
      %p182 = pneg %p101
      %p183 = pneg %p98
      %p184 = pneg %p127
      %p185 = pneg %p124
      %s186 = smul.u32 16, %s17
      %p187 = scmp.lt.s32.totalorder %s186, 31
      %s188 = scalar_select %p187, %s186, 31
      %s189 = smul.addr %s188, 8
      %s190 = scalar_lea.vmem %s4, %s189
      %s191 = smul.u32 16, %s17
      %p192 = scmp.lt.s32.totalorder %s191, 31
      %s193 = scalar_select %p192, %s191, 31
      %s194 = smul.addr %s193, 8
      %s195 = scalar_lea.vmem %s0, %s194
      %s196 = smul.u32 16, %s17
      %s197 = smul.u32 16, %s17
      %p198 = scmp.lt.s32.totalorder %s197, 31
      %s199 = scalar_select %p198, %s197, 31
      %s200 = smul.addr %s199, 8
      %s201 = scalar_lea.vmem %s4, %s200
      %s202 = smul.u32 16, %s17
      %v203 = vld [vmem:[%s195] sm:$0xff]
      %v204 = vld [vmem:[%s195 + $0x8] sm:$0xff]
      %v205 = vld [vmem:[%s195 + $0x10] sm:$0xff]
      %v206 = vld [vmem:[%s195 + $0x18] sm:$0xff]
      %v207 = vld [vmem:[%s195 + $0x20] sm:$0xff]
      %v208 = vld [vmem:[%s195 + $0x28] sm:$0xff]
      %v209 = vld [vmem:[%s195 + $0x30] sm:$0xff]
      %v210 = vld [vmem:[%s195 + $0x38] sm:$0xff]
      %v211 = vld [vmem:[%s195 + $0x40] sm:$0xff]
      %v212 = vld [vmem:[%s195 + $0x48] sm:$0xff]
      %v213 = vld [vmem:[%s195 + $0x50] sm:$0xff]
      %v214 = vld [vmem:[%s195 + $0x58] sm:$0xff]
      %v215 = vld [vmem:[%s195 + $0x60] sm:$0xff]
      %v216 = vld [vmem:[%s195 + $0x68] sm:$0xff]
      %v217 = vld [vmem:[%s195 + $0x70] sm:$0xff]
      %v218 = vld [vmem:[%s195 + $0x78] sm:$0xff]
      %v219 = vld [vmem:[%s1] sm:$0x1]
      %v220 = vperm.slane %v219, 0
      %v221 = vmul.f32 %v203, %v220
      %v222 = vmul.f32 %v204, %v220
      %v223 = vmul.f32 %v205, %v220
      %v224 = vmul.f32 %v206, %v220
      %v225 = vmul.f32 %v207, %v220
      %v226 = vmul.f32 %v208, %v220
      %v227 = vmul.f32 %v209, %v220
      %v228 = vmul.f32 %v210, %v220
      %v229 = vmul.f32 %v211, %v220
      %v230 = vmul.f32 %v212, %v220
      %v231 = vmul.f32 %v213, %v220
      %v232 = vmul.f32 %v214, %v220
      %v233 = vmul.f32 %v215, %v220
      %v234 = vmul.f32 %v216, %v220
      %v235 = vmul.f32 %v217, %v220
      %v236 = vmul.f32 %v218, %v220
      %v237 = vld [vmem:[%s1 + $0x1] sm:$0x1]
      %v238 = vperm.slane %v237, 0
      %v239 = vadd.f32 %v221, %v238
      %v240 = vadd.f32 %v222, %v238
      %v241 = vadd.f32 %v223, %v238
      %v242 = vadd.f32 %v224, %v238
      %v243 = vadd.f32 %v225, %v238
      %v244 = vadd.f32 %v226, %v238
      %v245 = vadd.f32 %v227, %v238
      %v246 = vadd.f32 %v228, %v238
      %v247 = vadd.f32 %v229, %v238
      %v248 = vadd.f32 %v230, %v238
      %v249 = vadd.f32 %v231, %v238
      %v250 = vadd.f32 %v232, %v238
      %v251 = vadd.f32 %v233, %v238
      %v252 = vadd.f32 %v234, %v238
      %v253 = vadd.f32 %v235, %v238
      %v254 = vadd.f32 %v236, %v238
      %vm255 = vcmp.gt.f32.partialorder %v239, 0.0
      %vm256 = vcmp.gt.f32.partialorder %v240, 0.0
      %vm257 = vcmp.gt.f32.partialorder %v241, 0.0
      %vm258 = vcmp.gt.f32.partialorder %v242, 0.0
      %vm259 = vcmp.gt.f32.partialorder %v243, 0.0
      %vm260 = vcmp.gt.f32.partialorder %v244, 0.0
      %vm261 = vcmp.gt.f32.partialorder %v245, 0.0
      %vm262 = vcmp.gt.f32.partialorder %v246, 0.0
      %vm263 = vcmp.gt.f32.partialorder %v247, 0.0
      %vm264 = vcmp.gt.f32.partialorder %v248, 0.0
      %vm265 = vcmp.gt.f32.partialorder %v249, 0.0
      %vm266 = vcmp.gt.f32.partialorder %v250, 0.0
      %vm267 = vcmp.gt.f32.partialorder %v251, 0.0
      %vm268 = vcmp.gt.f32.partialorder %v252, 0.0
      %vm269 = vcmp.gt.f32.partialorder %v253, 0.0
      %vm270 = vcmp.gt.f32.partialorder %v254, 0.0
      %v271 = vmul.f32 %v239, 0.01
      %v272 = vmul.f32 %v240, 0.01
      %v273 = vmul.f32 %v241, 0.01
      %v274 = vmul.f32 %v242, 0.01
      %v275 = vmul.f32 %v243, 0.01
      %v276 = vmul.f32 %v244, 0.01
      %v277 = vmul.f32 %v245, 0.01
      %v278 = vmul.f32 %v246, 0.01
      %v279 = vmul.f32 %v247, 0.01
      %v280 = vmul.f32 %v248, 0.01
      %v281 = vmul.f32 %v249, 0.01
      %v282 = vmul.f32 %v250, 0.01
      %v283 = vmul.f32 %v251, 0.01
      %v284 = vmul.f32 %v252, 0.01
      %v285 = vmul.f32 %v253, 0.01
      %v286 = vmul.f32 %v254, 0.01
      %v287 = vsel %vm255, %v239, %v271
      %v288 = vsel %vm256, %v240, %v272
      %v289 = vsel %vm257, %v241, %v273
      %v290 = vsel %vm258, %v242, %v274
      %v291 = vsel %vm259, %v243, %v275
      %v292 = vsel %vm260, %v244, %v276
      %v293 = vsel %vm261, %v245, %v277
      %v294 = vsel %vm262, %v246, %v278
      %v295 = vsel %vm263, %v247, %v279
      %v296 = vsel %vm264, %v248, %v280
      %v297 = vsel %vm265, %v249, %v281
      %v298 = vsel %vm266, %v250, %v282
      %v299 = vsel %vm267, %v251, %v283
      %v300 = vsel %vm268, %v252, %v284
      %v301 = vsel %vm269, %v253, %v285
      %v302 = vsel %vm270, %v254, %v286
      %v303 = vld [vmem:[%s2] sm:$0x1]
      %v305 = vperm.slane %v303, 0
      %v307 = vmul.f32 %v287, %v305
      %v308 = vmul.f32 %v288, %v305
      %v309 = vmul.f32 %v289, %v305
      %v310 = vmul.f32 %v290, %v305
      %v311 = vmul.f32 %v291, %v305
      %v312 = vmul.f32 %v292, %v305
      %v313 = vmul.f32 %v293, %v305
      %v314 = vmul.f32 %v294, %v305
      %v315 = vmul.f32 %v295, %v305
      %v316 = vmul.f32 %v296, %v305
      %v317 = vmul.f32 %v297, %v305
      %v318 = vmul.f32 %v298, %v305
      %v319 = vmul.f32 %v299, %v305
      %v320 = vmul.f32 %v300, %v305
      %v321 = vmul.f32 %v301, %v305
      %v322 = vmul.f32 %v302, %v305
      %vm323 = vcmask 130048
      %v324 = vsel %vm323, %v307, 0.0
      %325 = vadd.xlane.f32.xlu0 %v324
      %v326 = vpop.xlane.xlu0 %325
      %v327 = vsel %vm323, %v308, 0.0
      %328 = vadd.xlane.f32.xlu0 %v327
      %v329 = vpop.xlane.xlu0 %328
      %v330 = vsel %vm323, %v309, 0.0
      %331 = vadd.xlane.f32.xlu0 %v330
      %v332 = vpop.xlane.xlu0 %331
      %v333 = vsel %vm323, %v310, 0.0
      %334 = vadd.xlane.f32.xlu0 %v333
      %v335 = vpop.xlane.xlu0 %334
      %v336 = vsel %vm323, %v311, 0.0
      %337 = vadd.xlane.f32.xlu0 %v336
      %v338 = vpop.xlane.xlu0 %337
      %v339 = vsel %vm323, %v312, 0.0
      %340 = vadd.xlane.f32.xlu0 %v339
      %v341 = vpop.xlane.xlu0 %340
      %v342 = vsel %vm323, %v313, 0.0
      %343 = vadd.xlane.f32.xlu0 %v342
      %v344 = vpop.xlane.xlu0 %343
      %v345 = vsel %vm323, %v314, 0.0
      %346 = vadd.xlane.f32.xlu0 %v345
      %v347 = vpop.xlane.xlu0 %346
      %v348 = vsel %vm323, %v315, 0.0
      %349 = vadd.xlane.f32.xlu0 %v348
      %v350 = vpop.xlane.xlu0 %349
      %v351 = vsel %vm323, %v316, 0.0
      %352 = vadd.xlane.f32.xlu0 %v351
      %v353 = vpop.xlane.xlu0 %352
      %v354 = vsel %vm323, %v317, 0.0
      %355 = vadd.xlane.f32.xlu0 %v354
      %v356 = vpop.xlane.xlu0 %355
      %v357 = vsel %vm323, %v318, 0.0
      %358 = vadd.xlane.f32.xlu0 %v357
      %v359 = vpop.xlane.xlu0 %358
      %v360 = vsel %vm323, %v319, 0.0
      %361 = vadd.xlane.f32.xlu0 %v360
      %v362 = vpop.xlane.xlu0 %361
      %v363 = vsel %vm323, %v320, 0.0
      %364 = vadd.xlane.f32.xlu0 %v363
      %v365 = vpop.xlane.xlu0 %364
      %v366 = vsel %vm323, %v321, 0.0
      %367 = vadd.xlane.f32.xlu0 %v366
      %v368 = vpop.xlane.xlu0 %367
      %v369 = vsel %vm323, %v322, 0.0
      %370 = vadd.xlane.f32.xlu0 %v369
      %v371 = vpop.xlane.xlu0 %370
      %v372 = vld [vmem:[#allocation2] sm:$0x1]
      %v374 = vperm.slane %v372, 0
      %v376 = vadd.f32 %v326, %v374
      %v377 = vadd.f32 %v329, %v374
      %v378 = vadd.f32 %v332, %v374
      %v379 = vadd.f32 %v335, %v374
      %v380 = vadd.f32 %v338, %v374
      %v381 = vadd.f32 %v341, %v374
      %v382 = vadd.f32 %v344, %v374
      %v383 = vadd.f32 %v347, %v374
      %v384 = vadd.f32 %v350, %v374
      %v385 = vadd.f32 %v353, %v374
      %v386 = vadd.f32 %v356, %v374
      %v387 = vadd.f32 %v359, %v374
      %v388 = vadd.f32 %v362, %v374
      %v389 = vadd.f32 %v365, %v374
      %v390 = vadd.f32 %v368, %v374
      %v391 = vadd.f32 %v371, %v374
      %v392 = vxor.u32 %v376, 2147483648
      %v393 = vxor.u32 %v377, 2147483648
      %v394 = vxor.u32 %v378, 2147483648
      %v395 = vxor.u32 %v379, 2147483648
      %v396 = vxor.u32 %v380, 2147483648
      %v397 = vxor.u32 %v381, 2147483648
      %v398 = vxor.u32 %v382, 2147483648
      %v399 = vxor.u32 %v383, 2147483648
      %v400 = vxor.u32 %v384, 2147483648
      %v401 = vxor.u32 %v385, 2147483648
      %v402 = vxor.u32 %v386, 2147483648
      %v403 = vxor.u32 %v387, 2147483648
      %v404 = vxor.u32 %v388, 2147483648
      %v405 = vxor.u32 %v389, 2147483648
      %v406 = vxor.u32 %v390, 2147483648
      %v407 = vxor.u32 %v391, 2147483648
      %v408 = vmul.f32 %v392, 1.442695
      %v409 = vpow.pop %v408
      %v410 = vmul.f32 %v393, 1.442695
      %v411 = vpow.pop %v410
      %v412 = vmul.f32 %v394, 1.442695
      %v413 = vpow.pop %v412
      %v414 = vmul.f32 %v395, 1.442695
      %v415 = vpow.pop %v414
      %v416 = vmul.f32 %v396, 1.442695
      %v417 = vpow.pop %v416
      %v418 = vmul.f32 %v397, 1.442695
      %v419 = vpow.pop %v418
      %v420 = vmul.f32 %v398, 1.442695
      %v421 = vpow.pop %v420
      %v422 = vmul.f32 %v399, 1.442695
      %v423 = vpow.pop %v422
      %v424 = vmul.f32 %v400, 1.442695
      %v425 = vpow.pop %v424
      %v426 = vmul.f32 %v401, 1.442695
      %v427 = vpow.pop %v426
      %v428 = vmul.f32 %v402, 1.442695
      %v429 = vpow.pop %v428
      %v430 = vmul.f32 %v403, 1.442695
      %v431 = vpow.pop %v430
      %v432 = vmul.f32 %v404, 1.442695
      %v433 = vpow.pop %v432
      %v434 = vmul.f32 %v405, 1.442695
      %v435 = vpow.pop %v434
      %v436 = vmul.f32 %v406, 1.442695
      %v437 = vpow.pop %v436
      %v438 = vmul.f32 %v407, 1.442695
      %v439 = vpow.pop %v438
      %v440 = vadd.f32 %v409, 1.0
      %v441 = vadd.f32 %v411, 1.0
      %v442 = vadd.f32 %v413, 1.0
      %v443 = vadd.f32 %v415, 1.0
      %v444 = vadd.f32 %v417, 1.0
      %v445 = vadd.f32 %v419, 1.0
      %v446 = vadd.f32 %v421, 1.0
      %v447 = vadd.f32 %v423, 1.0
      %v448 = vadd.f32 %v425, 1.0
      %v449 = vadd.f32 %v427, 1.0
      %v450 = vadd.f32 %v429, 1.0
      %v451 = vadd.f32 %v431, 1.0
      %v452 = vadd.f32 %v433, 1.0
      %v453 = vadd.f32 %v435, 1.0
      %v454 = vadd.f32 %v437, 1.0
      %v455 = vadd.f32 %v439, 1.0
      %v456 = vrcp.pop %v440
      %v457 = vmul.f32 %v440, %v456
      %v458 = vsub.f32 1.0, %v457
      %v459 = vmul.f32 %v456, %v458
      %v460 = vadd.f32 %v456, %v459
      %vm461 = vweird.f32 %v440
      %vm462 = vweird.f32 %v456
      %vm463 = vmor %vm461, %vm462
      %v464 = vsel %vm463, %v456, %v460
      %v465 = vand.u32 2147483647, %v440
      %vm466 = vcmp.eq.f32.partialorder %v465, 8.507059e+37
      %v467 = vand.u32 %v440, 2147483648
      %v468 = vor.u32 1.1754944e-38, %v467
      %v469 = vsel %vm466, %v468, %v464
      %v470 = vmul.f32 1.0, %v469
      %v471 = vrcp.pop %v441
      %v472 = vmul.f32 %v441, %v471
      %v473 = vsub.f32 1.0, %v472
      %v474 = vmul.f32 %v471, %v473
      %v475 = vadd.f32 %v471, %v474
      %vm476 = vweird.f32 %v441
      %vm477 = vweird.f32 %v471
      %vm478 = vmor %vm476, %vm477
      %v479 = vsel %vm478, %v471, %v475
      %v480 = vand.u32 2147483647, %v441
      %vm481 = vcmp.eq.f32.partialorder %v480, 8.507059e+37
      %v482 = vand.u32 %v441, 2147483648
      %v483 = vor.u32 1.1754944e-38, %v482
      %v484 = vsel %vm481, %v483, %v479
      %v485 = vmul.f32 1.0, %v484
      %v486 = vrcp.pop %v442
      %v487 = vmul.f32 %v442, %v486
      %v488 = vsub.f32 1.0, %v487
      %v489 = vmul.f32 %v486, %v488
      %v490 = vadd.f32 %v486, %v489
      %vm491 = vweird.f32 %v442
      %vm492 = vweird.f32 %v486
      %vm493 = vmor %vm491, %vm492
      %v494 = vsel %vm493, %v486, %v490
      %v495 = vand.u32 2147483647, %v442
      %vm496 = vcmp.eq.f32.partialorder %v495, 8.507059e+37
      %v497 = vand.u32 %v442, 2147483648
      %v498 = vor.u32 1.1754944e-38, %v497
      %v499 = vsel %vm496, %v498, %v494
      %v500 = vmul.f32 1.0, %v499
      %v501 = vrcp.pop %v443
      %v502 = vmul.f32 %v443, %v501
      %v503 = vsub.f32 1.0, %v502
      %v504 = vmul.f32 %v501, %v503
      %v505 = vadd.f32 %v501, %v504
      %vm506 = vweird.f32 %v443
      %vm507 = vweird.f32 %v501
      %vm508 = vmor %vm506, %vm507
      %v509 = vsel %vm508, %v501, %v505
      %v510 = vand.u32 2147483647, %v443
      %vm511 = vcmp.eq.f32.partialorder %v510, 8.507059e+37
      %v512 = vand.u32 %v443, 2147483648
      %v513 = vor.u32 1.1754944e-38, %v512
      %v514 = vsel %vm511, %v513, %v509
      %v515 = vmul.f32 1.0, %v514
      %v516 = vrcp.pop %v444
      %v517 = vmul.f32 %v444, %v516
      %v518 = vsub.f32 1.0, %v517
      %v519 = vmul.f32 %v516, %v518
      %v520 = vadd.f32 %v516, %v519
      %vm521 = vweird.f32 %v444
      %vm522 = vweird.f32 %v516
      %vm523 = vmor %vm521, %vm522
      %v524 = vsel %vm523, %v516, %v520
      %v525 = vand.u32 2147483647, %v444
      %vm526 = vcmp.eq.f32.partialorder %v525, 8.507059e+37
      %v527 = vand.u32 %v444, 2147483648
      %v528 = vor.u32 1.1754944e-38, %v527
      %v529 = vsel %vm526, %v528, %v524
      %v530 = vmul.f32 1.0, %v529
      %v531 = vrcp.pop %v445
      %v532 = vmul.f32 %v445, %v531
      %v533 = vsub.f32 1.0, %v532
      %v534 = vmul.f32 %v531, %v533
      %v535 = vadd.f32 %v531, %v534
      %vm536 = vweird.f32 %v445
      %vm537 = vweird.f32 %v531
      %vm538 = vmor %vm536, %vm537
      %v539 = vsel %vm538, %v531, %v535
      %v540 = vand.u32 2147483647, %v445
      %vm541 = vcmp.eq.f32.partialorder %v540, 8.507059e+37
      %v542 = vand.u32 %v445, 2147483648
      %v543 = vor.u32 1.1754944e-38, %v542
      %v544 = vsel %vm541, %v543, %v539
      %v545 = vmul.f32 1.0, %v544
      %v546 = vrcp.pop %v446
      %v547 = vmul.f32 %v446, %v546
      %v548 = vsub.f32 1.0, %v547
      %v549 = vmul.f32 %v546, %v548
      %v550 = vadd.f32 %v546, %v549
      %vm551 = vweird.f32 %v446
      %vm552 = vweird.f32 %v546
      %vm553 = vmor %vm551, %vm552
      %v554 = vsel %vm553, %v546, %v550
      %v555 = vand.u32 2147483647, %v446
      %vm556 = vcmp.eq.f32.partialorder %v555, 8.507059e+37
      %v557 = vand.u32 %v446, 2147483648
      %v558 = vor.u32 1.1754944e-38, %v557
      %v559 = vsel %vm556, %v558, %v554
      %v560 = vmul.f32 1.0, %v559
      %v561 = vrcp.pop %v447
      %v562 = vmul.f32 %v447, %v561
      %v563 = vsub.f32 1.0, %v562
      %v564 = vmul.f32 %v561, %v563
      %v565 = vadd.f32 %v561, %v564
      %vm566 = vweird.f32 %v447
      %vm567 = vweird.f32 %v561
      %vm568 = vmor %vm566, %vm567
      %v569 = vsel %vm568, %v561, %v565
      %v570 = vand.u32 2147483647, %v447
      %vm571 = vcmp.eq.f32.partialorder %v570, 8.507059e+37
      %v572 = vand.u32 %v447, 2147483648
      %v573 = vor.u32 1.1754944e-38, %v572
      %v574 = vsel %vm571, %v573, %v569
      %v575 = vmul.f32 1.0, %v574
      %v576 = vrcp.pop %v448
      %v577 = vmul.f32 %v448, %v576
      %v578 = vsub.f32 1.0, %v577
      %v579 = vmul.f32 %v576, %v578
      %v580 = vadd.f32 %v576, %v579
      %vm581 = vweird.f32 %v448
      %vm582 = vweird.f32 %v576
      %vm583 = vmor %vm581, %vm582
      %v584 = vsel %vm583, %v576, %v580
      %v585 = vand.u32 2147483647, %v448
      %vm586 = vcmp.eq.f32.partialorder %v585, 8.507059e+37
      %v587 = vand.u32 %v448, 2147483648
      %v588 = vor.u32 1.1754944e-38, %v587
      %v589 = vsel %vm586, %v588, %v584
      %v590 = vmul.f32 1.0, %v589
      %v591 = vrcp.pop %v449
      %v592 = vmul.f32 %v449, %v591
      %v593 = vsub.f32 1.0, %v592
      %v594 = vmul.f32 %v591, %v593
      %v595 = vadd.f32 %v591, %v594
      %vm596 = vweird.f32 %v449
      %vm597 = vweird.f32 %v591
      %vm598 = vmor %vm596, %vm597
      %v599 = vsel %vm598, %v591, %v595
      %v600 = vand.u32 2147483647, %v449
      %vm601 = vcmp.eq.f32.partialorder %v600, 8.507059e+37
      %v602 = vand.u32 %v449, 2147483648
      %v603 = vor.u32 1.1754944e-38, %v602
      %v604 = vsel %vm601, %v603, %v599
      %v605 = vmul.f32 1.0, %v604
      %v606 = vrcp.pop %v450
      %v607 = vmul.f32 %v450, %v606
      %v608 = vsub.f32 1.0, %v607
      %v609 = vmul.f32 %v606, %v608
      %v610 = vadd.f32 %v606, %v609
      %vm611 = vweird.f32 %v450
      %vm612 = vweird.f32 %v606
      %vm613 = vmor %vm611, %vm612
      %v614 = vsel %vm613, %v606, %v610
      %v615 = vand.u32 2147483647, %v450
      %vm616 = vcmp.eq.f32.partialorder %v615, 8.507059e+37
      %v617 = vand.u32 %v450, 2147483648
      %v618 = vor.u32 1.1754944e-38, %v617
      %v619 = vsel %vm616, %v618, %v614
      %v620 = vmul.f32 1.0, %v619
      %v621 = vrcp.pop %v451
      %v622 = vmul.f32 %v451, %v621
      %v623 = vsub.f32 1.0, %v622
      %v624 = vmul.f32 %v621, %v623
      %v625 = vadd.f32 %v621, %v624
      %vm626 = vweird.f32 %v451
      %vm627 = vweird.f32 %v621
      %vm628 = vmor %vm626, %vm627
      %v629 = vsel %vm628, %v621, %v625
      %v630 = vand.u32 2147483647, %v451
      %vm631 = vcmp.eq.f32.partialorder %v630, 8.507059e+37
      %v632 = vand.u32 %v451, 2147483648
      %v633 = vor.u32 1.1754944e-38, %v632
      %v634 = vsel %vm631, %v633, %v629
      %v635 = vmul.f32 1.0, %v634
      %v636 = vrcp.pop %v452
      %v637 = vmul.f32 %v452, %v636
      %v638 = vsub.f32 1.0, %v637
      %v639 = vmul.f32 %v636, %v638
      %v640 = vadd.f32 %v636, %v639
      %vm641 = vweird.f32 %v452
      %vm642 = vweird.f32 %v636
      %vm643 = vmor %vm641, %vm642
      %v644 = vsel %vm643, %v636, %v640
      %v645 = vand.u32 2147483647, %v452
      %vm646 = vcmp.eq.f32.partialorder %v645, 8.507059e+37
      %v647 = vand.u32 %v452, 2147483648
      %v648 = vor.u32 1.1754944e-38, %v647
      %v649 = vsel %vm646, %v648, %v644
      %v650 = vmul.f32 1.0, %v649
      %v651 = vrcp.pop %v453
      %v652 = vmul.f32 %v453, %v651
      %v653 = vsub.f32 1.0, %v652
      %v654 = vmul.f32 %v651, %v653
      %v655 = vadd.f32 %v651, %v654
      %vm656 = vweird.f32 %v453
      %vm657 = vweird.f32 %v651
      %vm658 = vmor %vm656, %vm657
      %v659 = vsel %vm658, %v651, %v655
      %v660 = vand.u32 2147483647, %v453
      %vm661 = vcmp.eq.f32.partialorder %v660, 8.507059e+37
      %v662 = vand.u32 %v453, 2147483648
      %v663 = vor.u32 1.1754944e-38, %v662
      %v664 = vsel %vm661, %v663, %v659
      %v665 = vmul.f32 1.0, %v664
      %v666 = vrcp.pop %v454
      %v667 = vmul.f32 %v454, %v666
      %v668 = vsub.f32 1.0, %v667
      %v669 = vmul.f32 %v666, %v668
      %v670 = vadd.f32 %v666, %v669
      %vm671 = vweird.f32 %v454
      %vm672 = vweird.f32 %v666
      %vm673 = vmor %vm671, %vm672
      %v674 = vsel %vm673, %v666, %v670
      %v675 = vand.u32 2147483647, %v454
      %vm676 = vcmp.eq.f32.partialorder %v675, 8.507059e+37
      %v677 = vand.u32 %v454, 2147483648
      %v678 = vor.u32 1.1754944e-38, %v677
      %v679 = vsel %vm676, %v678, %v674
      %v680 = vmul.f32 1.0, %v679
      %v681 = vrcp.pop %v455
      %v682 = vmul.f32 %v455, %v681
      %v683 = vsub.f32 1.0, %v682
      %v684 = vmul.f32 %v681, %v683
      %v685 = vadd.f32 %v681, %v684
      %vm686 = vweird.f32 %v455
      %vm687 = vweird.f32 %v681
      %vm688 = vmor %vm686, %vm687
      %v689 = vsel %vm688, %v681, %v685
      %v690 = vand.u32 2147483647, %v455
      %vm691 = vcmp.eq.f32.partialorder %v690, 8.507059e+37
      %v692 = vand.u32 %v455, 2147483648
      %v693 = vor.u32 1.1754944e-38, %v692
      %v694 = vsel %vm691, %v693, %v689
      %v695 = vmul.f32 1.0, %v694
      %vm696 = vcmask 7168
      %697 = vst.msk [vmem:[%s201] sm:$0xff] %vm696, %v470
      %698 = vst.msk [vmem:[%s201 + $0x8] sm:$0xff] %vm696, %v485
      %699 = vst.msk [vmem:[%s201 + $0x10] sm:$0xff] %vm696, %v500
      %700 = vst.msk [vmem:[%s201 + $0x18] sm:$0xff] %vm696, %v515
      %701 = vst.msk [vmem:[%s201 + $0x20] sm:$0xff] %vm696, %v530
      %702 = vst.msk [vmem:[%s201 + $0x28] sm:$0xff] %vm696, %v545
      %703 = vst.msk [vmem:[%s201 + $0x30] sm:$0xff] %vm696, %v560
      %704 = vst.msk [vmem:[%s201 + $0x38] sm:$0xff] %vm696, %v575
      %705 = vst.msk [vmem:[%s201 + $0x40] sm:$0xff] %vm696, %v590
      %706 = vst.msk [vmem:[%s201 + $0x48] sm:$0xff] %vm696, %v605
      %707 = vst.msk [vmem:[%s201 + $0x50] sm:$0xff] %vm696, %v620
      %708 = vst.msk [vmem:[%s201 + $0x58] sm:$0xff] %vm696, %v635
      %709 = vst.msk [vmem:[%s201 + $0x60] sm:$0xff] %vm696, %v650
      %710 = vst.msk [vmem:[%s201 + $0x68] sm:$0xff] %vm696, %v665
      %711 = vst.msk [vmem:[%s201 + $0x70] sm:$0xff] %vm696, %v680
      %712 = vst.msk [vmem:[%s201 + $0x78] sm:$0xff] %vm696, %v695
      %s713 = smul.u32 16, %s17
      %p714 = scmp.lt.s32.totalorder %s713, 31
      %s715 = scalar_select %p714, %s713, 31
      %s716 = smul.addr %s715, 8
      %s717 = scalar_lea.vmem %s4, %s716
      // Predicated region
      $region37: #{downstream_forward.7} parent=35 // pred_check
        %p718 = pneg %p124
      $region38: #{downstream_forward.7} parent=35 // pred_check_branch
        %720 = sbr.rel (%p718) target = $region40
      $region39: #{downstream_forward.7} parent=35 // pred_region
        %s721 = smul.u32 16, %s17
      $region40: #{downstream_forward.7} parent=35 // pred_fallthru
        _
    $region36: #{downstream_forward.7} parent=5 // pred_fallthru
      _
    %p722 = scmp.le.s32.totalorder 2, %s12
    // Predicated region
    $region41: #{downstream_forward.7} parent=5 // pred_check
      %p723 = pneg %p722
    $region42: #{downstream_forward.7} parent=5 // pred_check_branch
      %725 = sbr.rel (%p723) target = $region44
    $region43: #{downstream_forward.7} parent=5 // pred_region
      %s726 = ssub.s32 %s12, 2
      // Predicated region
      $region45: #{downstream_forward.7} parent=43 // pred_check
        %p727 = pneg %p130
      $region46: #{downstream_forward.7} parent=43 // pred_check_branch
        %729 = sbr.rel (%p727) target = $region48
      $region47: #{downstream_forward.7} parent=43 // pred_region
        %s730 = smul.u32 16, %s18
        %p731 = scmp.lt.s32.totalorder %s730, 31
        %s732 = scalar_select %p731, %s730, 31
        %s733 = smul.addr %s732, 8
        %s734 = scalar_lea.vmem %s4, %s733
      $region48: #{downstream_forward.7} parent=43 // pred_fallthru
        _
    $region44: #{downstream_forward.7} parent=5 // pred_fallthru
      _
  $region6: #{downstream_forward.7} parent=0 // loop_footer
    %s16 = sadd.s32 1, %s12
  $region7: #{downstream_forward.7} parent=0 // loop_footer_branch
    %11 = sbr.rel target = $region3
  $region8: #{downstream_forward.7} parent=0 // loop_exit
    _

// kernel: downstream_forward.5
$region0: #{downstream_forward.5}
  #allocation0 [shape = 'u32[]', space=smem, size = 0x4, offset = 0x4, fixed_abs, tag = 'smem constant byte address 0x4 - core index']
  #allocation1 [shape = 'u32[72,128]{1,0:T(1,128)}', space=vmem, size = 0x9000, scoped, tag = 'internal scratch']
  %s0 = inlined_call_operand.vmem [shape: f32[256,128], index: 0, kind: input, shape index: {}]
  %s1 = inlined_call_operand.vmem [shape: f32[2,128], index: 1, kind: input, shape index: {}]
  %s2 = inlined_call_operand.vmem [shape: f32[128,64], index: 2, kind: input, shape index: {}]
  %s3 = inlined_call_operand.vmem [shape: f32[256,64], index: 3, kind: output, shape index: {0}]
  %s4 = inlined_call_operand.vmem [shape: f32[2,64], index: 4, kind: output, shape index: {1}]
  %5 = xla_tuple %s3, %s4
  %s6 = sld [smem:[#allocation0]]
  $region57: #{downstream_forward.5} parent=0
    _
  %s8 = ssub.s32 1, %s6
  %s9 = scalar_select 0, %s8, %s6
  loop: start=0, step=1, limit=4
  $region2: #{downstream_forward.5} parent=0 // loop_pre_header
    _
  $region3: #{downstream_forward.5} parent=0 // loop_header
    %s11 = sphi 0, %s15
    %p12 = scmp.ge.s32.totalorder %s11, 4
    %s21 = sphi 0, %s23
    %s24 = sphi 0, %s21
    %s25 = sphi 0, %s24
    %s41 = sphi 0, %s25
    %s45 = sphi 0, %s45
    %s47 = sphi 0, %s45
    %s48 = sphi 0, %s47
    %s62 = sphi 0, %s48
    %s66 = sphi 0, %s66
    %s68 = sphi 0, %s66
    %s69 = sphi 0, %s68
    %s83 = sphi 0, %s69
    %s89 = sphi 0, %s91
    %s92 = sphi 0, %s89
    %s93 = sphi 0, %s92
    %s109 = sphi 0, %s93
    %s113 = sphi 0, %s113
    %s115 = sphi 0, %s113
    %s116 = sphi 0, %s115
    %s130 = sphi 0, %s116
  $region4: #{downstream_forward.5} parent=0 // loop_header_branch
    %14 = sbr.rel (%p12) target = $region8
  $region5: #{downstream_forward.5} parent=0 // loop_body
    %s16 = ssub.s32 %s11, 1
    %s17 = ssub.s32 %s11, 2
    %s18 = sadd.s32 %s11, 1
    %s19 = ssub.s32 %s11, %s18
    %p20 = scmp.eq.s32.totalorder %s19, 0
    %s22 = sadd.s32 %s21, 1
    %s23 = scalar_select %p20, %s21, %s22
    %p26 = pneg %p20
    %p27 = scmp.eq.s32.totalorder %s11, 1
    %p28 = por %p26, %p27
    %p29 = scmp.ne.s32.totalorder %s21, %s24
    %p30 = scmp.eq.s32.totalorder %s11, 0
    %p31 = por %p29, %p30
    %p32 = scmp.ne.s32.totalorder %s21, %s24
    %p33 = scmp.eq.s32.totalorder %s16, 1
    %p34 = por %p32, %p33
    %p35 = scmp.ne.s32.totalorder %s24, %s25
    %p36 = scmp.eq.s32.totalorder %s16, 0
    %p37 = por %p35, %p36
    %p38 = scmp.ne.s32.totalorder %s24, %s25
    %p39 = scmp.eq.s32.totalorder %s17, 1
    %p40 = por %p38, %p39
    %p42 = scmp.ne.s32.totalorder %s25, %s41
    %p43 = scmp.eq.s32.totalorder %s17, 0
    %p44 = por %p42, %p43
    %s46 = sadd.s32 %s45, 1
    %p49 = scmp.eq.s32.totalorder %s11, 1
    %p50 = scmp.ne.s32.totalorder %s45, %s47
    %p51 = scmp.eq.s32.totalorder %s11, 0
    %p52 = por %p50, %p51
    %p53 = scmp.ne.s32.totalorder %s45, %s47
    %p54 = scmp.eq.s32.totalorder %s16, 1
    %p55 = por %p53, %p54
    %p56 = scmp.ne.s32.totalorder %s47, %s48
    %p57 = scmp.eq.s32.totalorder %s16, 0
    %p58 = por %p56, %p57
    %p59 = scmp.ne.s32.totalorder %s47, %s48
    %p60 = scmp.eq.s32.totalorder %s17, 1
    %p61 = por %p59, %p60
    %p63 = scmp.ne.s32.totalorder %s48, %s62
    %p64 = scmp.eq.s32.totalorder %s17, 0
    %p65 = por %p63, %p64
    %s67 = sadd.s32 %s66, 1
    %p70 = scmp.eq.s32.totalorder %s11, 1
    %p71 = scmp.ne.s32.totalorder %s66, %s68
    %p72 = scmp.eq.s32.totalorder %s11, 0
    %p73 = por %p71, %p72
    %p74 = scmp.ne.s32.totalorder %s66, %s68
    %p75 = scmp.eq.s32.totalorder %s16, 1
    %p76 = por %p74, %p75
    %p77 = scmp.ne.s32.totalorder %s68, %s69
    %p78 = scmp.eq.s32.totalorder %s16, 0
    %p79 = por %p77, %p78
    %p80 = scmp.ne.s32.totalorder %s68, %s69
    %p81 = scmp.eq.s32.totalorder %s17, 1
    %p82 = por %p80, %p81
    %p84 = scmp.ne.s32.totalorder %s69, %s83
    %p85 = scmp.eq.s32.totalorder %s17, 0
    %p86 = por %p84, %p85
    %s87 = ssub.s32 %s11, %s18
    %p88 = scmp.eq.s32.totalorder %s87, 0
    %s90 = sadd.s32 %s89, 1
    %s91 = scalar_select %p88, %s89, %s90
    %p94 = pneg %p88
    %p95 = scmp.eq.s32.totalorder %s11, 1
    %p96 = por %p94, %p95
    %p97 = scmp.ne.s32.totalorder %s89, %s92
    %p98 = scmp.eq.s32.totalorder %s11, 0
    %p99 = por %p97, %p98
    %p100 = scmp.ne.s32.totalorder %s89, %s92
    %p101 = scmp.eq.s32.totalorder %s16, 1
    %p102 = por %p100, %p101
    %p103 = scmp.ne.s32.totalorder %s92, %s93
    %p104 = scmp.eq.s32.totalorder %s16, 0
    %p105 = por %p103, %p104
    %p106 = scmp.ne.s32.totalorder %s92, %s93
    %p107 = scmp.eq.s32.totalorder %s17, 1
    %p108 = por %p106, %p107
    %p110 = scmp.ne.s32.totalorder %s93, %s109
    %p111 = scmp.eq.s32.totalorder %s17, 0
    %p112 = por %p110, %p111
    %s114 = sadd.s32 %s113, 1
    %p117 = scmp.eq.s32.totalorder %s11, 1
    %p118 = scmp.ne.s32.totalorder %s113, %s115
    %p119 = scmp.eq.s32.totalorder %s11, 0
    %p120 = por %p118, %p119
    %p121 = scmp.ne.s32.totalorder %s113, %s115
    %p122 = scmp.eq.s32.totalorder %s16, 1
    %p123 = por %p121, %p122
    %p124 = scmp.ne.s32.totalorder %s115, %s116
    %p125 = scmp.eq.s32.totalorder %s16, 0
    %p126 = por %p124, %p125
    %p127 = scmp.ne.s32.totalorder %s115, %s116
    %p128 = scmp.eq.s32.totalorder %s17, 1
    %p129 = por %p127, %p128
    %p131 = scmp.ne.s32.totalorder %s116, %s130
    %p132 = scmp.eq.s32.totalorder %s17, 0
    %p133 = por %p131, %p132
    %p134 = scmp.le.s32.totalorder 1, %s11
    %p135 = scmp.lt.s32.totalorder %s11, 3
    %p136 = pnand %p134, %p135
    %p137 = pneg %p136
    // Predicated region
    $region9: #{downstream_forward.5} parent=5 // pred_check
      _
    $region10: #{downstream_forward.5} parent=5 // pred_check_branch
      %139 = sbr.rel (%p136) target = $region12
    $region11: #{downstream_forward.5} parent=5 // pred_region
      %s140 = ssub.s32 %s11, 1
      // Predicated region
      $region13: #{downstream_forward.5} parent=11 // pred_check
        %p141 = pneg %p58
      $region14: #{downstream_forward.5} parent=11 // pred_check_branch
        %143 = sbr.rel (%p141) target = $region16
      $region15: #{downstream_forward.5} parent=11 // pred_region
        _
      $region16: #{downstream_forward.5} parent=11 // pred_fallthru
        _
      // Predicated region
      $region17: #{downstream_forward.5} parent=11 // pred_check
        %p144 = pneg %p79
      $region18: #{downstream_forward.5} parent=11 // pred_check_branch
        %146 = sbr.rel (%p144) target = $region20
      $region19: #{downstream_forward.5} parent=11 // pred_region
        _
      $region20: #{downstream_forward.5} parent=11 // pred_fallthru
        _
    $region12: #{downstream_forward.5} parent=5 // pred_fallthru
      _
    %p147 = scmp.lt.s32.totalorder %s11, 2
    // Predicated region
    $region21: #{downstream_forward.5} parent=5 // pred_check
      %p148 = pneg %p147
    $region22: #{downstream_forward.5} parent=5 // pred_check_branch
      %150 = sbr.rel (%p148) target = $region24
    $region23: #{downstream_forward.5} parent=5 // pred_region
      // Predicated region
      $region25: #{downstream_forward.5} parent=23 // pred_check
        %p151 = pneg %p31
      $region26: #{downstream_forward.5} parent=23 // pred_check_branch
        %153 = sbr.rel (%p151) target = $region28
      $region27: #{downstream_forward.5} parent=23 // pred_region
        %s154 = smul.u32 16, %s11
        %p155 = scmp.lt.s32.totalorder %s154, 31
        %s156 = scalar_select %p155, %s154, 31
        %s157 = smul.addr %s156, 8
        %s158 = scalar_lea.vmem %s0, %s157
        %s159 = smul.u32 16, %s11
      $region28: #{downstream_forward.5} parent=23 // pred_fallthru
        _
    $region24: #{downstream_forward.5} parent=5 // pred_fallthru
      _
    %p160 = scmp.le.s32.totalorder 1, %s11
    %p161 = scmp.lt.s32.totalorder %s11, 3
    %p162 = pnand %p160, %p161
    %p163 = pneg %p162
    // Predicated region
    $region29: #{downstream_forward.5} parent=5 // pred_check
      _
    $region30: #{downstream_forward.5} parent=5 // pred_check_branch
      %165 = sbr.rel (%p162) target = $region32
    $region31: #{downstream_forward.5} parent=5 // pred_region
      %s166 = ssub.s32 %s11, 1
      %s167 = smul.u32 16, %s16
      %p168 = scmp.lt.s32.totalorder %s167, 31
      %s169 = scalar_select %p168, %s167, 31
      %s170 = smul.addr %s169, 8
      %s171 = scalar_lea.vmem %s0, %s170
      %p172 = pneg %p37
      %p173 = pneg %p34
      %p174 = pneg %p58
      %p175 = pneg %p55
      %p176 = pneg %p79
      %p177 = pneg %p76
      %p178 = pneg %p105
      %p179 = pneg %p102
      %s180 = smul.u32 16, %s16
      %p181 = scmp.lt.s32.totalorder %s180, 31
      %s182 = scalar_select %p181, %s180, 31
      %s183 = smul.addr %s182, 8
      %s184 = scalar_lea.vmem %s3, %s183
      %p185 = pneg %p126
      %p186 = pneg %p123
      %s187 = smul.u32 16, %s16
      %p188 = scmp.lt.s32.totalorder %s187, 31
      %s189 = scalar_select %p188, %s187, 31
      %s190 = smul.addr %s189, 8
      %s191 = scalar_lea.vmem %s0, %s190
      %s192 = smul.u32 16, %s16
      %s193 = smul.u32 16, %s16
      %p194 = scmp.lt.s32.totalorder %s193, 31
      %s195 = scalar_select %p194, %s193, 31
      %s196 = smul.addr %s195, 8
      %s197 = scalar_lea.vmem %s3, %s196
      %s198 = smul.u32 16, %s16
      %v199 = vld [vmem:[%s191] sm:$0xff]
      %v200 = vld [vmem:[%s191 + $0x8] sm:$0xff]
      %v201 = vld [vmem:[%s191 + $0x10] sm:$0xff]
      %v202 = vld [vmem:[%s191 + $0x18] sm:$0xff]
      %v203 = vld [vmem:[%s191 + $0x20] sm:$0xff]
      %v204 = vld [vmem:[%s191 + $0x28] sm:$0xff]
      %v205 = vld [vmem:[%s191 + $0x30] sm:$0xff]
      %v206 = vld [vmem:[%s191 + $0x38] sm:$0xff]
      %v207 = vld [vmem:[%s191 + $0x40] sm:$0xff]
      %v208 = vld [vmem:[%s191 + $0x48] sm:$0xff]
      %v209 = vld [vmem:[%s191 + $0x50] sm:$0xff]
      %v210 = vld [vmem:[%s191 + $0x58] sm:$0xff]
      %v211 = vld [vmem:[%s191 + $0x60] sm:$0xff]
      %v212 = vld [vmem:[%s191 + $0x68] sm:$0xff]
      %v213 = vld [vmem:[%s191 + $0x70] sm:$0xff]
      %v214 = vld [vmem:[%s191 + $0x78] sm:$0xff]
      %v215 = vld [vmem:[%s1] sm:$0x1]
      %v216 = vperm.slane %v215, 0
      %v217 = vmul.f32 %v199, %v216
      %v218 = vmul.f32 %v200, %v216
      %v219 = vmul.f32 %v201, %v216
      %v220 = vmul.f32 %v202, %v216
      %v221 = vmul.f32 %v203, %v216
      %v222 = vmul.f32 %v204, %v216
      %v223 = vmul.f32 %v205, %v216
      %v224 = vmul.f32 %v206, %v216
      %v225 = vmul.f32 %v207, %v216
      %v226 = vmul.f32 %v208, %v216
      %v227 = vmul.f32 %v209, %v216
      %v228 = vmul.f32 %v210, %v216
      %v229 = vmul.f32 %v211, %v216
      %v230 = vmul.f32 %v212, %v216
      %v231 = vmul.f32 %v213, %v216
      %v232 = vmul.f32 %v214, %v216
      %v233 = vld [vmem:[%s1 + $0x1] sm:$0x1]
      %v234 = vperm.slane %v233, 0
      %v235 = vadd.f32 %v217, %v234
      %v236 = vadd.f32 %v218, %v234
      %v237 = vadd.f32 %v219, %v234
      %v238 = vadd.f32 %v220, %v234
      %v239 = vadd.f32 %v221, %v234
      %v240 = vadd.f32 %v222, %v234
      %v241 = vadd.f32 %v223, %v234
      %v242 = vadd.f32 %v224, %v234
      %v243 = vadd.f32 %v225, %v234
      %v244 = vadd.f32 %v226, %v234
      %v245 = vadd.f32 %v227, %v234
      %v246 = vadd.f32 %v228, %v234
      %v247 = vadd.f32 %v229, %v234
      %v248 = vadd.f32 %v230, %v234
      %v249 = vadd.f32 %v231, %v234
      %v250 = vadd.f32 %v232, %v234
      %vm251 = vcmp.gt.f32.partialorder %v235, 0.0
      %vm252 = vcmp.gt.f32.partialorder %v236, 0.0
      %vm253 = vcmp.gt.f32.partialorder %v237, 0.0
      %vm254 = vcmp.gt.f32.partialorder %v238, 0.0
      %vm255 = vcmp.gt.f32.partialorder %v239, 0.0
      %vm256 = vcmp.gt.f32.partialorder %v240, 0.0
      %vm257 = vcmp.gt.f32.partialorder %v241, 0.0
      %vm258 = vcmp.gt.f32.partialorder %v242, 0.0
      %vm259 = vcmp.gt.f32.partialorder %v243, 0.0
      %vm260 = vcmp.gt.f32.partialorder %v244, 0.0
      %vm261 = vcmp.gt.f32.partialorder %v245, 0.0
      %vm262 = vcmp.gt.f32.partialorder %v246, 0.0
      %vm263 = vcmp.gt.f32.partialorder %v247, 0.0
      %vm264 = vcmp.gt.f32.partialorder %v248, 0.0
      %vm265 = vcmp.gt.f32.partialorder %v249, 0.0
      %vm266 = vcmp.gt.f32.partialorder %v250, 0.0
      %v267 = vmul.f32 %v235, 0.01
      %v268 = vmul.f32 %v236, 0.01
      %v269 = vmul.f32 %v237, 0.01
      %v270 = vmul.f32 %v238, 0.01
      %v271 = vmul.f32 %v239, 0.01
      %v272 = vmul.f32 %v240, 0.01
      %v273 = vmul.f32 %v241, 0.01
      %v274 = vmul.f32 %v242, 0.01
      %v275 = vmul.f32 %v243, 0.01
      %v276 = vmul.f32 %v244, 0.01
      %v277 = vmul.f32 %v245, 0.01
      %v278 = vmul.f32 %v246, 0.01
      %v279 = vmul.f32 %v247, 0.01
      %v280 = vmul.f32 %v248, 0.01
      %v281 = vmul.f32 %v249, 0.01
      %v282 = vmul.f32 %v250, 0.01
      %v283 = vsel %vm251, %v235, %v267
      %v284 = vsel %vm252, %v236, %v268
      %v285 = vsel %vm253, %v237, %v269
      %v286 = vsel %vm254, %v238, %v270
      %v287 = vsel %vm255, %v239, %v271
      %v288 = vsel %vm256, %v240, %v272
      %v289 = vsel %vm257, %v241, %v273
      %v290 = vsel %vm258, %v242, %v274
      %v291 = vsel %vm259, %v243, %v275
      %v292 = vsel %vm260, %v244, %v276
      %v293 = vsel %vm261, %v245, %v277
      %v294 = vsel %vm262, %v246, %v278
      %v295 = vsel %vm263, %v247, %v279
      %v296 = vsel %vm264, %v248, %v280
      %v297 = vsel %vm265, %v249, %v281
      %v298 = vsel %vm266, %v250, %v282
      %s299 = smul.u32 %s16, 128
      %v300 = vlaneseq
      %v301 = vshrl.u32 %v300, 7
      %v302 = vadd.s32 %v301, 8
      %v303 = vadd.s32 %v301, 16
      %v304 = vadd.s32 %v301, 24
      %v305 = vadd.s32 %v301, 32
      %v306 = vadd.s32 %v301, 40
      %v307 = vadd.s32 %v301, 48
      %v308 = vadd.s32 %v301, 56
      %v309 = vadd.s32 %v301, 64
      %v310 = vadd.s32 %v301, 72
      %v311 = vadd.s32 %v301, 80
      %v312 = vadd.s32 %v301, 88
      %v313 = vadd.s32 %v301, 96
      %v314 = vadd.s32 %v301, 104
      %v315 = vadd.s32 %v301, 112
      %v316 = vadd.s32 %v301, 120
      %v317 = vstv %s299
      %v318 = vadd.s32 %v317, %v301
      %v319 = vadd.s32 %v317, %v302
      %v320 = vadd.s32 %v317, %v303
      %v321 = vadd.s32 %v317, %v304
      %v322 = vadd.s32 %v317, %v305
      %v323 = vadd.s32 %v317, %v306
      %v324 = vadd.s32 %v317, %v307
      %v325 = vadd.s32 %v317, %v308
      %v326 = vadd.s32 %v317, %v309
      %v327 = vadd.s32 %v317, %v310
      %v328 = vadd.s32 %v317, %v311
      %v329 = vadd.s32 %v317, %v312
      %v330 = vadd.s32 %v317, %v313
      %v331 = vadd.s32 %v317, %v314
      %v332 = vadd.s32 %v317, %v315
      %v333 = vadd.s32 %v317, %v316
      %vm334 = vcmp.lt.s32.totalorder %v318, 200
      %vm335 = vcmp.lt.s32.totalorder %v319, 200
      %vm336 = vcmp.lt.s32.totalorder %v320, 200
      %vm337 = vcmp.lt.s32.totalorder %v321, 200
      %vm338 = vcmp.lt.s32.totalorder %v322, 200
      %vm339 = vcmp.lt.s32.totalorder %v323, 200
      %vm340 = vcmp.lt.s32.totalorder %v324, 200
      %vm341 = vcmp.lt.s32.totalorder %v325, 200
      %vm342 = vcmp.lt.s32.totalorder %v326, 200
      %vm343 = vcmp.lt.s32.totalorder %v327, 200
      %vm344 = vcmp.lt.s32.totalorder %v328, 200
      %vm345 = vcmp.lt.s32.totalorder %v329, 200
      %vm346 = vcmp.lt.s32.totalorder %v330, 200
      %vm347 = vcmp.lt.s32.totalorder %v331, 200
      %vm348 = vcmp.lt.s32.totalorder %v332, 200
      %vm349 = vcmp.lt.s32.totalorder %v333, 200
      %v350 = vsel %vm334, 1, 0
      %v351 = vsel %vm335, 1, 0
      %v352 = vsel %vm336, 1, 0
      %v353 = vsel %vm337, 1, 0
      %v354 = vsel %vm338, 1, 0
      %v355 = vsel %vm339, 1, 0
      %v356 = vsel %vm340, 1, 0
      %v357 = vsel %vm341, 1, 0
      %v358 = vsel %vm342, 1, 0
      %v359 = vsel %vm343, 1, 0
      %v360 = vsel %vm344, 1, 0
      %v361 = vsel %vm345, 1, 0
      %v362 = vsel %vm346, 1, 0
      %v363 = vsel %vm347, 1, 0
      %v364 = vsel %vm348, 1, 0
      %v365 = vsel %vm349, 1, 0
      %vm366 = vcmp.eq.s32.totalorder %v350, 1
      %vm367 = vcmp.eq.s32.totalorder %v351, 1
      %vm368 = vcmp.eq.s32.totalorder %v352, 1
      %vm369 = vcmp.eq.s32.totalorder %v353, 1
      %vm370 = vcmp.eq.s32.totalorder %v354, 1
      %vm371 = vcmp.eq.s32.totalorder %v355, 1
      %vm372 = vcmp.eq.s32.totalorder %v356, 1
      %vm373 = vcmp.eq.s32.totalorder %v357, 1
      %vm374 = vcmp.eq.s32.totalorder %v358, 1
      %vm375 = vcmp.eq.s32.totalorder %v359, 1
      %vm376 = vcmp.eq.s32.totalorder %v360, 1
      %vm377 = vcmp.eq.s32.totalorder %v361, 1
      %vm378 = vcmp.eq.s32.totalorder %v362, 1
      %vm379 = vcmp.eq.s32.totalorder %v363, 1
      %vm380 = vcmp.eq.s32.totalorder %v364, 1
      %vm381 = vcmp.eq.s32.totalorder %v365, 1
      %v382 = vsel %vm366, %v283, 0.0
      %v383 = vsel %vm367, %v284, 0.0
      %v384 = vsel %vm368, %v285, 0.0
      %v385 = vsel %vm369, %v286, 0.0
      %v386 = vsel %vm370, %v287, 0.0
      %v387 = vsel %vm371, %v288, 0.0
      %v388 = vsel %vm372, %v289, 0.0
      %v389 = vsel %vm373, %v290, 0.0
      %v390 = vsel %vm374, %v291, 0.0
      %v391 = vsel %vm375, %v292, 0.0
      %v392 = vsel %vm376, %v293, 0.0
      %v393 = vsel %vm377, %v294, 0.0
      %v394 = vsel %vm378, %v295, 0.0
      %v395 = vsel %vm379, %v296, 0.0
      %v396 = vsel %vm380, %v297, 0.0
      %v397 = vsel %vm381, %v298, 0.0
      %v398 = vld [vmem:[%s2] sm:$0xff]
      %v399 = vld [vmem:[%s2 + $0x8] sm:$0xff]
      %v400 = vld [vmem:[%s2 + $0x10] sm:$0xff]
      %v401 = vld [vmem:[%s2 + $0x18] sm:$0xff]
      %v402 = vld [vmem:[%s2 + $0x20] sm:$0xff]
      %v403 = vld [vmem:[%s2 + $0x28] sm:$0xff]
      %v404 = vld [vmem:[%s2 + $0x30] sm:$0xff]
      %v405 = vld [vmem:[%s2 + $0x38] sm:$0xff]
      %v406 = vld [vmem:[%s2 + $0x40] sm:$0xff]
      %v407 = vld [vmem:[%s2 + $0x48] sm:$0xff]
      %v408 = vld [vmem:[%s2 + $0x50] sm:$0xff]
      %v409 = vld [vmem:[%s2 + $0x58] sm:$0xff]
      %v410 = vld [vmem:[%s2 + $0x60] sm:$0xff]
      %v411 = vld [vmem:[%s2 + $0x68] sm:$0xff]
      %v412 = vld [vmem:[%s2 + $0x70] sm:$0xff]
      %v413 = vld [vmem:[%s2 + $0x78] sm:$0xff]
      %414 = vmatpush.msra.mxu0 %v413
      %415 = vmatpush.msra.mxu0 %v412
      %416 = vmatpush.msra.mxu0 %v411
      %417 = vmatpush.msra.mxu0 %v410
      %418 = vmatpush.msra.mxu0 %v409
      %419 = vmatpush.msra.mxu0 %v408
      %420 = vmatpush.msra.mxu0 %v407
      %421 = vmatpush.msra.mxu0 %v406
      %422 = vmatpush.msra.mxu0 %v405
      %423 = vmatpush.msra.mxu0 %v404
      %424 = vmatpush.msra.mxu0 %v403
      %425 = vmatpush.msra.mxu0 %v402
      %426 = vmatpush.msra.mxu0 %v401
      %427 = vmatpush.msra.mxu0 %v400
      %428 = vmatpush.msra.mxu0 %v399
      %429 = vmatpush.msra.mxu0 %v398
      %430 = vmatmul.f32.gmra.mxu0 %v382
      %v431 = vpop.f32.mrf.mxu0
      %v432 = vadd.f32 0.0, %v431
      %433 = vmatmul.f32.gmra.mxu0 %v383
      %v434 = vpop.f32.mrf.mxu0
      %v435 = vadd.f32 0.0, %v434
      %436 = vmatmul.f32.gmra.mxu0 %v384
      %v437 = vpop.f32.mrf.mxu0
      %v438 = vadd.f32 0.0, %v437
      %439 = vmatmul.f32.gmra.mxu0 %v385
      %v440 = vpop.f32.mrf.mxu0
      %v441 = vadd.f32 0.0, %v440
      %442 = vmatmul.f32.gmra.mxu0 %v386
      %v443 = vpop.f32.mrf.mxu0
      %v444 = vadd.f32 0.0, %v443
      %445 = vmatmul.f32.gmra.mxu0 %v387
      %v446 = vpop.f32.mrf.mxu0
      %v447 = vadd.f32 0.0, %v446
      %448 = vmatmul.f32.gmra.mxu0 %v388
      %v449 = vpop.f32.mrf.mxu0
      %v450 = vadd.f32 0.0, %v449
      %451 = vmatmul.f32.gmra.mxu0 %v389
      %v452 = vpop.f32.mrf.mxu0
      %v453 = vadd.f32 0.0, %v452
      %454 = vmatmul.f32.gmra.mxu0 %v390
      %v455 = vpop.f32.mrf.mxu0
      %v456 = vadd.f32 0.0, %v455
      %457 = vmatmul.f32.gmra.mxu0 %v391
      %v458 = vpop.f32.mrf.mxu0
      %v459 = vadd.f32 0.0, %v458
      %460 = vmatmul.f32.gmra.mxu0 %v392
      %v461 = vpop.f32.mrf.mxu0
      %v462 = vadd.f32 0.0, %v461
      %463 = vmatmul.f32.gmra.mxu0 %v393
      %v464 = vpop.f32.mrf.mxu0
      %v465 = vadd.f32 0.0, %v464
      %466 = vmatmul.f32.gmra.mxu0 %v394
      %v467 = vpop.f32.mrf.mxu0
      %v468 = vadd.f32 0.0, %v467
      %469 = vmatmul.f32.gmra.mxu0 %v395
      %v470 = vpop.f32.mrf.mxu0
      %v471 = vadd.f32 0.0, %v470
      %472 = vmatmul.f32.gmra.mxu0 %v396
      %v473 = vpop.f32.mrf.mxu0
      %v474 = vadd.f32 0.0, %v473
      %475 = vmatmul.f32.gmra.mxu0 %v397
      %v476 = vpop.f32.mrf.mxu0
      %v477 = vadd.f32 0.0, %v476
      %478 = vdwg.mxu0
      %vm479 = vcmask 523264
      %480 = vst.msk [vmem:[%s197] sm:$0xff] %vm479, %v432
      %481 = vst.msk [vmem:[%s197 + $0x8] sm:$0xff] %vm479, %v435
      %482 = vst.msk [vmem:[%s197 + $0x10] sm:$0xff] %vm479, %v438
      %483 = vst.msk [vmem:[%s197 + $0x18] sm:$0xff] %vm479, %v441
      %484 = vst.msk [vmem:[%s197 + $0x20] sm:$0xff] %vm479, %v444
      %485 = vst.msk [vmem:[%s197 + $0x28] sm:$0xff] %vm479, %v447
      %486 = vst.msk [vmem:[%s197 + $0x30] sm:$0xff] %vm479, %v450
      %487 = vst.msk [vmem:[%s197 + $0x38] sm:$0xff] %vm479, %v453
      %488 = vst.msk [vmem:[%s197 + $0x40] sm:$0xff] %vm479, %v456
      %489 = vst.msk [vmem:[%s197 + $0x48] sm:$0xff] %vm479, %v459
      %490 = vst.msk [vmem:[%s197 + $0x50] sm:$0xff] %vm479, %v462
      %491 = vst.msk [vmem:[%s197 + $0x58] sm:$0xff] %vm479, %v465
      %492 = vst.msk [vmem:[%s197 + $0x60] sm:$0xff] %vm479, %v468
      %493 = vst.msk [vmem:[%s197 + $0x68] sm:$0xff] %vm479, %v471
      %494 = vst.msk [vmem:[%s197 + $0x70] sm:$0xff] %vm479, %v474
      %495 = vst.msk [vmem:[%s197 + $0x78] sm:$0xff] %vm479, %v477
      %p496 = scmp.eq.s32.totalorder %s16, 0
      // Predicated region
      $region33: #{downstream_forward.5} parent=31 // pred_check
        %p497 = pneg %p496
      $region34: #{downstream_forward.5} parent=31 // pred_check_branch
        %499 = sbr.rel (%p497) target = $region36
      $region35: #{downstream_forward.5} parent=31 // pred_region
        %vm500 = vcmask 517120
        %501 = vst.msk [vmem:[%s4] sm:$0x3] %vm500, 0.0
      $region36: #{downstream_forward.5} parent=31 // pred_fallthru
        _
      %v502 = vld [vmem:[%s4] sm:$0x1]
      %v503 = vsel %vm479, %v432, 0.0
      %v504 = vsel %vm479, %v435, 0.0
      %v505 = vadd.f32 %v503, %v504
      %v506 = vsel %vm479, %v438, 0.0
      %v507 = vadd.f32 %v505, %v506
      %v508 = vsel %vm479, %v441, 0.0
      %v509 = vadd.f32 %v507, %v508
      %v510 = vsel %vm479, %v444, 0.0
      %v511 = vadd.f32 %v509, %v510
      %v512 = vsel %vm479, %v447, 0.0
      %v513 = vadd.f32 %v511, %v512
      %v514 = vsel %vm479, %v450, 0.0
      %v515 = vadd.f32 %v513, %v514
      %v516 = vsel %vm479, %v453, 0.0
      %v517 = vadd.f32 %v515, %v516
      %v518 = vsel %vm479, %v456, 0.0
      %v519 = vadd.f32 %v517, %v518
      %v520 = vsel %vm479, %v459, 0.0
      %v521 = vadd.f32 %v519, %v520
      %v522 = vsel %vm479, %v462, 0.0
      %v523 = vadd.f32 %v521, %v522
      %v524 = vsel %vm479, %v465, 0.0
      %v525 = vadd.f32 %v523, %v524
      %v526 = vsel %vm479, %v468, 0.0
      %v527 = vadd.f32 %v525, %v526
      %v528 = vsel %vm479, %v471, 0.0
      %v529 = vadd.f32 %v527, %v528
      %v530 = vsel %vm479, %v474, 0.0
      %v531 = vadd.f32 %v529, %v530
      %v532 = vsel %vm479, %v477, 0.0
      %v533 = vadd.f32 %v531, %v532
      %v534 = vrot.slane %v533, 4
      %v535 = vadd.f32 %v533, %v534
      %v536 = vrot.slane %v535, 2
      %v537 = vadd.f32 %v535, %v536
      %v538 = vrot.slane %v537, 1
      %v539 = vadd.f32 %v537, %v538
      %v540 = vadd.f32 %v502, %v539
      %vm541 = vcmask 516096
      %542 = vst.msk [vmem:[%s4] sm:$0x1] %vm541, %v540
      %v543 = vld [vmem:[%s4 + $0x1] sm:$0x1]
      %v544 = vmul.f32 %v432, %v432
      %v545 = vmul.f32 %v435, %v435
      %v546 = vmul.f32 %v438, %v438
      %v547 = vmul.f32 %v441, %v441
      %v548 = vmul.f32 %v444, %v444
      %v549 = vmul.f32 %v447, %v447
      %v550 = vmul.f32 %v450, %v450
      %v551 = vmul.f32 %v453, %v453
      %v552 = vmul.f32 %v456, %v456
      %v553 = vmul.f32 %v459, %v459
      %v554 = vmul.f32 %v462, %v462
      %v555 = vmul.f32 %v465, %v465
      %v556 = vmul.f32 %v468, %v468
      %v557 = vmul.f32 %v471, %v471
      %v558 = vmul.f32 %v474, %v474
      %v559 = vmul.f32 %v477, %v477
      %v560 = vsel %vm479, %v544, 0.0
      %v561 = vsel %vm479, %v545, 0.0
      %v562 = vadd.f32 %v560, %v561
      %v563 = vsel %vm479, %v546, 0.0
      %v564 = vadd.f32 %v562, %v563
      %v565 = vsel %vm479, %v547, 0.0
      %v566 = vadd.f32 %v564, %v565
      %v567 = vsel %vm479, %v548, 0.0
      %v568 = vadd.f32 %v566, %v567
      %v569 = vsel %vm479, %v549, 0.0
      %v570 = vadd.f32 %v568, %v569
      %v571 = vsel %vm479, %v550, 0.0
      %v572 = vadd.f32 %v570, %v571
      %v573 = vsel %vm479, %v551, 0.0
      %v574 = vadd.f32 %v572, %v573
      %v575 = vsel %vm479, %v552, 0.0
      %v576 = vadd.f32 %v574, %v575
      %v577 = vsel %vm479, %v553, 0.0
      %v578 = vadd.f32 %v576, %v577
      %v579 = vsel %vm479, %v554, 0.0
      %v580 = vadd.f32 %v578, %v579
      %v581 = vsel %vm479, %v555, 0.0
      %v582 = vadd.f32 %v580, %v581
      %v583 = vsel %vm479, %v556, 0.0
      %v584 = vadd.f32 %v582, %v583
      %v585 = vsel %vm479, %v557, 0.0
      %v586 = vadd.f32 %v584, %v585
      %v587 = vsel %vm479, %v558, 0.0
      %v588 = vadd.f32 %v586, %v587
      %v589 = vsel %vm479, %v559, 0.0
      %v590 = vadd.f32 %v588, %v589
      %v591 = vrot.slane %v590, 4
      %v592 = vadd.f32 %v590, %v591
      %v593 = vrot.slane %v592, 2
      %v594 = vadd.f32 %v592, %v593
      %v595 = vrot.slane %v594, 1
      %v596 = vadd.f32 %v594, %v595
      %v597 = vadd.f32 %v543, %v596
      %598 = vst.msk [vmem:[%s4 + $0x1] sm:$0x1] %vm541, %v597
      %s599 = smul.u32 16, %s16
      %p600 = scmp.lt.s32.totalorder %s599, 31
      %s601 = scalar_select %p600, %s599, 31
      %s602 = smul.addr %s601, 8
      %s603 = scalar_lea.vmem %s3, %s602
      // Predicated region
      $region37: #{downstream_forward.5} parent=31 // pred_check
        %p604 = pneg %p102
      $region38: #{downstream_forward.5} parent=31 // pred_check_branch
        %606 = sbr.rel (%p604) target = $region40
      $region39: #{downstream_forward.5} parent=31 // pred_region
        %s607 = smul.u32 16, %s16
      $region40: #{downstream_forward.5} parent=31 // pred_fallthru
        _
      // Predicated region
      $region41: #{downstream_forward.5} parent=31 // pred_check
        %p608 = pneg %p123
      $region42: #{downstream_forward.5} parent=31 // pred_check_branch
        %610 = sbr.rel (%p608) target = $region44
      $region43: #{downstream_forward.5} parent=31 // pred_region
        _
      $region44: #{downstream_forward.5} parent=31 // pred_fallthru
        _
      // Predicated region
      $region45: #{downstream_forward.5} parent=31 // pred_check
        %p611 = pneg %p123
      $region46: #{downstream_forward.5} parent=31 // pred_check_branch
        %613 = sbr.rel (%p611) target = $region48
      $region47: #{downstream_forward.5} parent=31 // pred_region
        _
      $region48: #{downstream_forward.5} parent=31 // pred_fallthru
        _
    $region32: #{downstream_forward.5} parent=5 // pred_fallthru
      _
    %p614 = scmp.le.s32.totalorder 2, %s11
    // Predicated region
    $region49: #{downstream_forward.5} parent=5 // pred_check
      %p615 = pneg %p614
    $region50: #{downstream_forward.5} parent=5 // pred_check_branch
      %617 = sbr.rel (%p615) target = $region52
    $region51: #{downstream_forward.5} parent=5 // pred_region
      %s618 = ssub.s32 %s11, 2
      // Predicated region
      $region53: #{downstream_forward.5} parent=51 // pred_check
        %p619 = pneg %p108
      $region54: #{downstream_forward.5} parent=51 // pred_check_branch
        %621 = sbr.rel (%p619) target = $region56
      $region55: #{downstream_forward.5} parent=51 // pred_region
        %s622 = smul.u32 16, %s17
        %p623 = scmp.lt.s32.totalorder %s622, 31
        %s624 = scalar_select %p623, %s622, 31
        %s625 = smul.addr %s624, 8
        %s626 = scalar_lea.vmem %s3, %s625
      $region56: #{downstream_forward.5} parent=51 // pred_fallthru
        _
    $region52: #{downstream_forward.5} parent=5 // pred_fallthru
      _
  $region6: #{downstream_forward.5} parent=0 // loop_footer
    %s15 = sadd.s32 1, %s11
  $region7: #{downstream_forward.5} parent=0 // loop_footer_branch
    %10 = sbr.rel target = $region3
  $region8: #{downstream_forward.5} parent=0 // loop_exit
    _

</llo_original>
